<compile_context>
chip_gen: v6e
topology: v6e:2x2x1
jax: 0.10.0
libtpu: 0.0.40
codegen_flags: <defaults>
</compile_context>

<pallas_src>
import math

import jax
import jax.numpy as jnp
import numpy as np
from jax.experimental import pallas as pl
from jax.experimental.pallas import tpu as pltpu  # noqa: F401

# ---------------- config (small, consistent with the module) ----------------
HIDDEN = 64
N_HEAD = 4
HEAD_SIZE = HIDDEN // N_HEAD                  # 16
ROTARY_PCT = 0.25
ROTARY_NDIMS = int(HEAD_SIZE * ROTARY_PCT)    # 4
INTERMEDIATE = 4 * HIDDEN                     # 256
MAX_POS = 32
ROTARY_BASE = 10000
LN_EPS = 1e-5
B = 2
T = 8
MASK_MIN = -1e9

# Fused first-stage matmul layout: each 64-wide segment padded to 128 lanes so
# every in-kernel slice starts on a lane-tile boundary.
SEG = 128
OFF_Q, OFF_QR, OFF_K, OFF_KR, OFF_V, OFF_FC1 = 0, 128, 256, 384, 512, 640
FUSED_W = OFF_FC1 + INTERMEDIATE              # 896


# ------------------------------- kernel --------------------------------------
def _block_kernel(x_ref, w_fused_ref, b_fused_ref, w_dense_ref, w_fc2_ref,
                  b_tail_ref, cos_ref, sin_ref, mask_ref, o_ref):
    x = x_ref[...]                                   # (N, H), N = batch*seq

    # Single LayerNorm statistics pass (shared by the attention and MLP branches;
    # the per-branch gains/biases are folded into the weights).
    mu = jnp.mean(x, axis=-1, keepdims=True)
    xc = x - mu
    var = jnp.mean(xc * xc, axis=-1, keepdims=True)
    xn = xc * jax.lax.rsqrt(var + LN_EPS)

    # One fused, lane-dense first-stage matmul: q | q_rot | k | k_rot | v | fc1.
    fused = (jnp.dot(xn, w_fused_ref[...], preferred_element_type=jnp.float32)
             + b_fused_ref[...])

    q = fused[:, OFF_Q:OFF_Q + HIDDEN]               # already carries 1/sqrt(hs)
    qr = fused[:, OFF_QR:OFF_QR + HIDDEN]            # (q @ rotate_half) pre-folded
    k = fused[:, OFF_K:OFF_K + HIDDEN]
    kr = fused[:, OFF_KR:OFF_KR + HIDDEN]
    v = fused[:, OFF_V:OFF_V + HIDDEN]
    m1 = fused[:, OFF_FC1:OFF_FC1 + INTERMEDIATE]

    # Rotary embedding: tables are pre-widened (cos=1 / sin=0 on pass-through dims).
    cos = cos_ref[...]
    sin = sin_ref[...]
    qe = q * cos + qr * sin
    ke = k * cos + kr * sin

    # Attention over ALL rows at once per head; the (N,N) mask is block-diagonal
    # per batch (cross-batch entries at -1e9 vanish in softmax).
    mask = mask_ref[...]
    head_outs = []
    for h in range(N_HEAD):                          # 4 unrolled head iterations
        c0 = h * HEAD_SIZE
        qh = qe[:, c0:c0 + HEAD_SIZE]                # (N, hs) static VMEM slices
        kh = ke[:, c0:c0 + HEAD_SIZE]
        vh = v[:, c0:c0 + HEAD_SIZE]
        s = jax.lax.dot_general(qh, kh, (((1,), (1,)), ((), ())),
                                preferred_element_type=jnp.float32) + mask
        mx = jnp.max(s, axis=-1, keepdims=True)
        e = jnp.exp(s - mx)
        w = e * pl.reciprocal(jnp.sum(e, axis=-1, keepdims=True), approx=True)
        head_outs.append(jnp.dot(w, vh, preferred_element_type=jnp.float32))
    attn = jnp.concatenate(head_outs, axis=-1)       # (N, H), head-major merge

    # MLP branch: fc1 pre-activation already computed in the fused matmul.
    g = 0.5 * m1 * (1.0 + jax.lax.erf(m1 * (1.0 / math.sqrt(2.0))))   # exact GELU

    # Fused residuals + pre-summed tail biases, single full-row store.
    o_ref[...] = (jnp.dot(attn, w_dense_ref[...], preferred_element_type=jnp.float32)
                  + jnp.dot(g, w_fc2_ref[...], preferred_element_type=jnp.float32)
                  + x + b_tail_ref[...])


# ------------------------- one-time parameter prep ----------------------------
def _rotate_half_matrix():
    """Block-diagonal (H,H) matrix so that (x @ P) == per-head rotate_half on
    the first ROTARY_NDIMS dims (and zero on the pass-through dims)."""
    p = np.zeros((HEAD_SIZE, HEAD_SIZE), np.float32)
    half = ROTARY_NDIMS // 2
    for i in range(half):
        p[half + i, i] = -1.0      # out[i]      = -x[half+i]
        p[i, half + i] = 1.0       # out[half+i] =  x[i]
    big = np.zeros((HIDDEN, HIDDEN), np.float32)
    for h in range(N_HEAD):
        big[h * HEAD_SIZE:(h + 1) * HEAD_SIZE,
            h * HEAD_SIZE:(h + 1) * HEAD_SIZE] = p
    return big


def prepare_block_params(params):
    """Fold LN gains/biases, the rotate-half matrix, the attention scale, the
    QKV head split and the rotary-table widening into init-time constants."""
    h, hs, nh = HIDDEN, HEAD_SIZE, N_HEAD

    # Head-major split of the interleaved QKV projection.
    wq3 = params["w_qkv"].reshape(h, nh, 3, hs)
    w_q = wq3[:, :, 0, :].reshape(h, h)
    w_k = wq3[:, :, 1, :].reshape(h, h)
    w_v = wq3[:, :, 2, :].reshape(h, h)
    bq3 = params["b_qkv"].reshape(nh, 3, hs)
    b_q = bq3[:, 0, :].reshape(h)
    b_k = bq3[:, 1, :].reshape(h)
    b_v = bq3[:, 2, :].reshape(h)

    g1, b1 = params["ln1_g"], params["ln1_b"]
    g2, b2 = params["ln2_g"], params["ln2_b"]

    # Fold LN1 gain/bias into q/k/v, LN2 gain/bias into fc1.
    w_qf = g1[:, None] * w_q
    b_qf = b1 @ w_q + b_q
    w_kf = g1[:, None] * w_k
    b_kf = b1 @ w_k + b_k
    w_vf = g1[:, None] * w_v
    b_vf = b1 @ w_v + b_v
    w_fc1f = g2[:, None] * params["w_fc1"]
    b_fc1f = b2 @ params["w_fc1"] + params["b_fc1"]

    # Fold the 1/sqrt(head_size) score scale into the q path (0.25 is exact).
    scale = 1.0 / math.sqrt(hs)
    w_qf = w_qf * scale
    b_qf = b_qf * scale

    # Pre-apply the rotate-half matrix so q_rot/k_rot become independent
    # columns of the single fused first-stage matmul.
    rotp = jnp.asarray(_rotate_half_matrix())
    w_qr = w_qf @ rotp
    b_qr = b_qf @ rotp
    w_kr = w_kf @ rotp
    b_kr = b_kf @ rotp

    def seg(w, b, width):
        wp = jnp.zeros((h, width), jnp.float32).at[:, :w.shape[1]].set(w)
        bp = jnp.zeros((width,), jnp.float32).at[:b.shape[0]].set(b)
        return wp, bp

    parts = [seg(w_qf, b_qf, SEG), seg(w_qr, b_qr, SEG), seg(w_kf, b_kf, SEG),
             seg(w_kr, b_kr, SEG), seg(w_vf, b_vf, SEG),
             seg(w_fc1f, b_fc1f, INTERMEDIATE)]
    w_fused = jnp.concatenate([p[0] for p in parts], axis=1)          # (64, 896)
    b_fused = jnp.concatenate([p[1] for p in parts], axis=0).reshape(1, FUSED_W)

    # Widened, head-tiled rotary tables: (MAX_POS, HIDDEN) so the per-call
    # wrapper just row-gathers by position id.
    pad1 = jnp.ones((MAX_POS, hs - ROTARY_NDIMS), jnp.float32)
    pad0 = jnp.zeros((MAX_POS, hs - ROTARY_NDIMS), jnp.float32)
    cos_full = jnp.tile(jnp.concatenate([params["cos_tab"], pad1], -1), (1, nh))
    sin_full = jnp.tile(jnp.concatenate([params["sin_tab"], pad0], -1), (1, nh))

    return dict(
        w_fused=w_fused, b_fused=b_fused,
        w_dense=params["w_dense"], w_fc2=params["w_fc2"],
        b_tail=(params["b_dense"] + params["b_fc2"]).reshape(1, h),
        cos_full=cos_full, sin_full=sin_full,
    )


# ------------------------------ wrapper ---------------------------------------
def block_forward(prep, x, position_ids, attention_mask):
    bsz, seq, hdim = x.shape
    n = bsz * seq
    x2d = x.reshape(n, hdim)

    # Per-call glue kept minimal: one rotary row-gather + one mask build.
    pos = position_ids.reshape(-1)
    cos = prep["cos_full"][pos]                          # (N, H)
    sin = prep["sin_full"][pos]

    # Block-diagonal (N, N) mask: user mask inside each batch block, -1e9
    # everywhere else (cross-batch entries vanish in softmax).
    mask_bt = attention_mask.reshape(bsz, seq, seq).astype(jnp.float32)
    eyeb = jnp.eye(bsz, dtype=bool)[:, None, :, None]    # (B,1,B,1)
    mask_full = jnp.where(eyeb, mask_bt[:, :, None, :], MASK_MIN).reshape(n, n)

    out = pl.pallas_call(
        _block_kernel,
        out_shape=jax.ShapeDtypeStruct((n, hdim), jnp.float32),
    )(x2d, prep["w_fused"], prep["b_fused"], prep["w_dense"], prep["w_fc2"],
      prep["b_tail"], cos, sin, mask_full)
    return out.reshape(bsz, seq, hdim)


# ------------------------- params & pure-JAX reference -----------------------
def init_params(key):
    ks = jax.random.split(key, 4)

    def lin(k, fan_in, fan_out):
        kw, kb = jax.random.split(k)
        bound = 1.0 / math.sqrt(fan_in)
        w = jax.random.uniform(kw, (fan_in, fan_out), jnp.float32, -bound, bound)
        b = jax.random.uniform(kb, (fan_out,), jnp.float32, -bound, bound)
        return w, b

    w_qkv, b_qkv = lin(ks[0], HIDDEN, 3 * HIDDEN)
    w_dense, b_dense = lin(ks[1], HIDDEN, HIDDEN)
    w_fc1, b_fc1 = lin(ks[2], HIDDEN, INTERMEDIATE)
    w_fc2, b_fc2 = lin(ks[3], INTERMEDIATE, HIDDEN)

    inv_freq = 1.0 / (ROTARY_BASE ** (
        jnp.arange(0, ROTARY_NDIMS, 2, dtype=jnp.float32) / ROTARY_NDIMS))
    t = jnp.arange(MAX_POS, dtype=jnp.float32)
    freqs = jnp.einsum("i,j->ij", t, inv_freq)
    emb = jnp.concatenate([freqs, freqs], axis=-1)   # (MAX_POS, rotary_ndims)

    return dict(
        ln1_g=jnp.ones((HIDDEN,), jnp.float32), ln1_b=jnp.zeros((HIDDEN,), jnp.float32),
        ln2_g=jnp.ones((HIDDEN,), jnp.float32), ln2_b=jnp.zeros((HIDDEN,), jnp.float32),
        w_qkv=w_qkv, b_qkv=b_qkv, w_dense=w_dense, b_dense=b_dense,
        w_fc1=w_fc1, b_fc1=b_fc1, w_fc2=w_fc2, b_fc2=b_fc2,
        cos_tab=jnp.cos(emb), sin_tab=jnp.sin(emb),
    )


def reference_block(params, x, position_ids, attention_mask):
    def ln(v, g, b):
        mu = v.mean(-1, keepdims=True)
        var = ((v - mu) ** 2).mean(-1, keepdims=True)
        return (v - mu) / jnp.sqrt(var + LN_EPS) * g + b

    h1 = ln(x, params["ln1_g"], params["ln1_b"])
    qkv = h1 @ params["w_qkv"] + params["b_qkv"]
    qkv = qkv.reshape(B, T, N_HEAD, 3 * HEAD_SIZE)
    q = jnp.transpose(qkv[..., :HEAD_SIZE], (0, 2, 1, 3))
    k = jnp.transpose(qkv[..., HEAD_SIZE:2 * HEAD_SIZE], (0, 2, 1, 3))
    v = jnp.transpose(qkv[..., 2 * HEAD_SIZE:], (0, 2, 1, 3))

    cos = params["cos_tab"][position_ids][:, None]   # (B,1,T,rd)
    sin = params["sin_tab"][position_ids][:, None]
    half = ROTARY_NDIMS // 2

    def rot_half(t_):
        return jnp.concatenate([-t_[..., half:], t_[..., :half]], axis=-1)

    q_rot, q_pass = q[..., :ROTARY_NDIMS], q[..., ROTARY_NDIMS:]
    k_rot, k_pass = k[..., :ROTARY_NDIMS], k[..., ROTARY_NDIMS:]
    q_rot = q_rot * cos + rot_half(q_rot) * sin
    k_rot = k_rot * cos + rot_half(k_rot) * sin
    q = jnp.concatenate([q_rot, q_pass], axis=-1)
    k = jnp.concatenate([k_rot, k_pass], axis=-1)

    scores = jnp.einsum("bhqd,bhkd->bhqk", q, k) / math.sqrt(HEAD_SIZE)
    scores = scores + attention_mask
    w = jax.nn.softmax(scores, axis=-1)
    attn = jnp.einsum("bhqk,bhkd->bhqd", w, v)
    attn = jnp.transpose(attn, (0, 2, 1, 3)).reshape(B, T, HIDDEN)
    attn_out = attn @ params["w_dense"] + params["b_dense"]

    h2 = ln(x, params["ln2_g"], params["ln2_b"])
    m = h2 @ params["w_fc1"] + params["b_fc1"]
    m = 0.5 * m * (1.0 + jax.lax.erf(m * (1.0 / math.sqrt(2.0))))   # exact GELU
    mlp_out = m @ params["w_fc2"] + params["b_fc2"]
    return mlp_out + attn_out + x


# --------------------------------- main --------------------------------------
if __name__ == "__main__":
    key = jax.random.PRNGKey(0)
    kp, kx = jax.random.split(key)
    params = init_params(kp)
    prep = jax.tree_util.tree_map(jax.block_until_ready, prepare_block_params(params))

    x = jax.random.normal(kx, (B, T, HIDDEN), dtype=jnp.float32)
    position_ids = jnp.broadcast_to(jnp.arange(T, dtype=jnp.int32), (B, T))
    causal = jnp.tril(jnp.ones((T, T), dtype=bool))
    attention_mask = jnp.where(causal, 0.0, MASK_MIN).astype(jnp.float32)
    attention_mask = jnp.broadcast_to(attention_mask, (B, 1, T, T))

    fwd = jax.jit(block_forward)
    out = jax.block_until_ready(fwd(prep, x, position_ids, attention_mask))

    ref = jax.block_until_ready(reference_block(params, x, position_ids, attention_mask))
    np.testing.assert_allclose(np.asarray(out), np.asarray(ref), rtol=2e-3, atol=2e-3)

    print("KERNEL_OK")
</pallas_src>

<mosaic_0001>
module attributes {stable_mosaic.version = 11 : i64} {
  func.func @_block_kernel(%arg0: memref<16x64xf32, #tpu.memory_space<vmem>>, %arg1: memref<64x896xf32, #tpu.memory_space<vmem>>, %arg2: memref<1x896xf32, #tpu.memory_space<vmem>>, %arg3: memref<64x64xf32, #tpu.memory_space<vmem>>, %arg4: memref<256x64xf32, #tpu.memory_space<vmem>>, %arg5: memref<1x64xf32, #tpu.memory_space<vmem>>, %arg6: memref<16x64xf32, #tpu.memory_space<vmem>>, %arg7: memref<16x64xf32, #tpu.memory_space<vmem>>, %arg8: memref<16x16xf32, #tpu.memory_space<vmem>>, %arg9: memref<16x64xf32, #tpu.memory_space<vmem>>) attributes {dimension_semantics = [], scalar_prefetch = 0 : i64, scratch_operands = 0 : i64, tpu.core_type = #tpu.core_type<tc>} {
    %c0 = arith.constant 0 : index
    %c0_0 = arith.constant 0 : index
    %0 = vector.load %arg0[%c0, %c0_0] : memref<16x64xf32, #tpu.memory_space<vmem>>, vector<16x64xf32>
    %cst = arith.constant dense<0.000000e+00> : vector<16xf32>
    %1 = vector.multi_reduction <add>, %0, %cst [1] : vector<16x64xf32> to vector<16xf32>
    %2 = vector.shape_cast %1 : vector<16xf32> to vector<16x1xf32>
    %cst_1 = arith.constant 6.400000e+01 : f32
    %3 = vector.broadcast %cst_1 : f32 to vector<16x1xf32>
    %4 = arith.divf %2, %3 : vector<16x1xf32>
    %5 = vector.broadcast %4 : vector<16x1xf32> to vector<16x64xf32>
    %6 = arith.subf %0, %5 : vector<16x64xf32>
    %7 = arith.mulf %6, %6 : vector<16x64xf32>
    %cst_2 = arith.constant dense<0.000000e+00> : vector<16xf32>
    %8 = vector.multi_reduction <add>, %7, %cst_2 [1] : vector<16x64xf32> to vector<16xf32>
    %9 = vector.shape_cast %8 : vector<16xf32> to vector<16x1xf32>
    %cst_3 = arith.constant 6.400000e+01 : f32
    %10 = vector.broadcast %cst_3 : f32 to vector<16x1xf32>
    %11 = arith.divf %9, %10 : vector<16x1xf32>
    %cst_4 = arith.constant 9.99999974E-6 : f32
    %12 = vector.broadcast %cst_4 : f32 to vector<16x1xf32>
    %13 = arith.addf %11, %12 : vector<16x1xf32>
    %14 = math.rsqrt %13 : vector<16x1xf32>
    %15 = vector.broadcast %14 : vector<16x1xf32> to vector<16x64xf32>
    %16 = arith.mulf %6, %15 : vector<16x64xf32>
    %c0_5 = arith.constant 0 : index
    %c0_6 = arith.constant 0 : index
    %17 = vector.load %arg1[%c0_5, %c0_6] : memref<64x896xf32, #tpu.memory_space<vmem>>, vector<64x896xf32>
    %cst_7 = arith.constant dense<0.000000e+00> : vector<16x896xf32>
    %18 = tpu.matmul %16, %17, %cst_7 {dimension_numbers = #tpu.dot_dimension_numbers<[1], [0], [0], [1], [0, 0, 1, 1], [], []>} : vector<16x64xf32>, vector<64x896xf32>, vector<16x896xf32> -> vector<16x896xf32>
    %c0_8 = arith.constant 0 : index
    %c0_9 = arith.constant 0 : index
    %19 = vector.load %arg2[%c0_8, %c0_9] : memref<1x896xf32, #tpu.memory_space<vmem>>, vector<1x896xf32>
    %20 = vector.broadcast %19 : vector<1x896xf32> to vector<16x896xf32>
    %21 = arith.addf %18, %20 : vector<16x896xf32>
    %22 = vector.extract_strided_slice %21 {offsets = [0, 0], sizes = [16, 64], strides = [1, 1]} : vector<16x896xf32> to vector<16x64xf32>
    %23 = vector.extract_strided_slice %21 {offsets = [0, 128], sizes = [16, 64], strides = [1, 1]} : vector<16x896xf32> to vector<16x64xf32>
    %24 = vector.extract_strided_slice %21 {offsets = [0, 256], sizes = [16, 64], strides = [1, 1]} : vector<16x896xf32> to vector<16x64xf32>
    %25 = vector.extract_strided_slice %21 {offsets = [0, 384], sizes = [16, 64], strides = [1, 1]} : vector<16x896xf32> to vector<16x64xf32>
    %26 = vector.extract_strided_slice %21 {offsets = [0, 512], sizes = [16, 64], strides = [1, 1]} : vector<16x896xf32> to vector<16x64xf32>
    %27 = vector.extract_strided_slice %21 {offsets = [0, 640], sizes = [16, 256], strides = [1, 1]} : vector<16x896xf32> to vector<16x256xf32>
    %c0_10 = arith.constant 0 : index
    %c0_11 = arith.constant 0 : index
    %28 = vector.load %arg6[%c0_10, %c0_11] : memref<16x64xf32, #tpu.memory_space<vmem>>, vector<16x64xf32>
    %c0_12 = arith.constant 0 : index
    %c0_13 = arith.constant 0 : index
    %29 = vector.load %arg7[%c0_12, %c0_13] : memref<16x64xf32, #tpu.memory_space<vmem>>, vector<16x64xf32>
    %30 = arith.mulf %22, %28 : vector<16x64xf32>
    %31 = arith.mulf %23, %29 : vector<16x64xf32>
    %32 = arith.addf %30, %31 : vector<16x64xf32>
    %33 = arith.mulf %24, %28 : vector<16x64xf32>
    %34 = arith.mulf %25, %29 : vector<16x64xf32>
    %35 = arith.addf %33, %34 : vector<16x64xf32>
    %c0_14 = arith.constant 0 : index
    %c0_15 = arith.constant 0 : index
    %36 = vector.load %arg8[%c0_14, %c0_15] : memref<16x16xf32, #tpu.memory_space<vmem>>, vector<16x16xf32>
    %37 = vector.extract_strided_slice %32 {offsets = [0, 0], sizes = [16, 16], strides = [1, 1]} : vector<16x64xf32> to vector<16x16xf32>
    %38 = vector.extract_strided_slice %35 {offsets = [0, 0], sizes = [16, 16], strides = [1, 1]} : vector<16x64xf32> to vector<16x16xf32>
    %39 = vector.extract_strided_slice %26 {offsets = [0, 0], sizes = [16, 16], strides = [1, 1]} : vector<16x64xf32> to vector<16x16xf32>
    %cst_16 = arith.constant dense<0.000000e+00> : vector<16x16xf32>
    %40 = tpu.matmul %37, %38, %cst_16 {dimension_numbers = #tpu.dot_dimension_numbers<[1], [1], [0], [0], [0, 0, 1, 0], [], []>} : vector<16x16xf32>, vector<16x16xf32>, vector<16x16xf32> -> vector<16x16xf32>
    %41 = arith.addf %40, %36 : vector<16x16xf32>
    %cst_17 = arith.constant dense<0xFF800000> : vector<16xf32>
    %42 = vector.multi_reduction <maximumf>, %41, %cst_17 [1] : vector<16x16xf32> to vector<16xf32>
    %43 = vector.shape_cast %42 : vector<16xf32> to vector<16x1xf32>
    %44 = vector.broadcast %43 : vector<16x1xf32> to vector<16x16xf32>
    %45 = arith.subf %41, %44 : vector<16x16xf32>
    %46 = math.exp %45 : vector<16x16xf32>
    %cst_18 = arith.constant dense<0.000000e+00> : vector<16xf32>
    %47 = vector.multi_reduction <add>, %46, %cst_18 [1] : vector<16x16xf32> to vector<16xf32>
    %48 = vector.shape_cast %47 : vector<16xf32> to vector<16x1xf32>
    %49 = tpu.reciprocal %48 {approx = true} : vector<16x1xf32> -> vector<16x1xf32>
    %50 = vector.broadcast %49 : vector<16x1xf32> to vector<16x16xf32>
    %51 = arith.mulf %46, %50 : vector<16x16xf32>
    %cst_19 = arith.constant dense<0.000000e+00> : vector<16x16xf32>
    %52 = tpu.matmul %51, %39, %cst_19 {dimension_numbers = #tpu.dot_dimension_numbers<[1], [0], [0], [1], [0, 0, 1, 1], [], []>} : vector<16x16xf32>, vector<16x16xf32>, vector<16x16xf32> -> vector<16x16xf32>
    %53 = vector.extract_strided_slice %32 {offsets = [0, 16], sizes = [16, 16], strides = [1, 1]} : vector<16x64xf32> to vector<16x16xf32>
    %54 = vector.extract_strided_slice %35 {offsets = [0, 16], sizes = [16, 16], strides = [1, 1]} : vector<16x64xf32> to vector<16x16xf32>
    %55 = vector.extract_strided_slice %26 {offsets = [0, 16], sizes = [16, 16], strides = [1, 1]} : vector<16x64xf32> to vector<16x16xf32>
    %cst_20 = arith.constant dense<0.000000e+00> : vector<16x16xf32>
    %56 = tpu.matmul %53, %54, %cst_20 {dimension_numbers = #tpu.dot_dimension_numbers<[1], [1], [0], [0], [0, 0, 1, 0], [], []>} : vector<16x16xf32>, vector<16x16xf32>, vector<16x16xf32> -> vector<16x16xf32>
    %57 = arith.addf %56, %36 : vector<16x16xf32>
    %cst_21 = arith.constant dense<0xFF800000> : vector<16xf32>
    %58 = vector.multi_reduction <maximumf>, %57, %cst_21 [1] : vector<16x16xf32> to vector<16xf32>
    %59 = vector.shape_cast %58 : vector<16xf32> to vector<16x1xf32>
    %60 = vector.broadcast %59 : vector<16x1xf32> to vector<16x16xf32>
    %61 = arith.subf %57, %60 : vector<16x16xf32>
    %62 = math.exp %61 : vector<16x16xf32>
    %cst_22 = arith.constant dense<0.000000e+00> : vector<16xf32>
    %63 = vector.multi_reduction <add>, %62, %cst_22 [1] : vector<16x16xf32> to vector<16xf32>
    %64 = vector.shape_cast %63 : vector<16xf32> to vector<16x1xf32>
    %65 = tpu.reciprocal %64 {approx = true} : vector<16x1xf32> -> vector<16x1xf32>
    %66 = vector.broadcast %65 : vector<16x1xf32> to vector<16x16xf32>
    %67 = arith.mulf %62, %66 : vector<16x16xf32>
    %cst_23 = arith.constant dense<0.000000e+00> : vector<16x16xf32>
    %68 = tpu.matmul %67, %55, %cst_23 {dimension_numbers = #tpu.dot_dimension_numbers<[1], [0], [0], [1], [0, 0, 1, 1], [], []>} : vector<16x16xf32>, vector<16x16xf32>, vector<16x16xf32> -> vector<16x16xf32>
    %69 = vector.extract_strided_slice %32 {offsets = [0, 32], sizes = [16, 16], strides = [1, 1]} : vector<16x64xf32> to vector<16x16xf32>
    %70 = vector.extract_strided_slice %35 {offsets = [0, 32], sizes = [16, 16], strides = [1, 1]} : vector<16x64xf32> to vector<16x16xf32>
    %71 = vector.extract_strided_slice %26 {offsets = [0, 32], sizes = [16, 16], strides = [1, 1]} : vector<16x64xf32> to vector<16x16xf32>
    %cst_24 = arith.constant dense<0.000000e+00> : vector<16x16xf32>
    %72 = tpu.matmul %69, %70, %cst_24 {dimension_numbers = #tpu.dot_dimension_numbers<[1], [1], [0], [0], [0, 0, 1, 0], [], []>} : vector<16x16xf32>, vector<16x16xf32>, vector<16x16xf32> -> vector<16x16xf32>
    %73 = arith.addf %72, %36 : vector<16x16xf32>
    %cst_25 = arith.constant dense<0xFF800000> : vector<16xf32>
    %74 = vector.multi_reduction <maximumf>, %73, %cst_25 [1] : vector<16x16xf32> to vector<16xf32>
    %75 = vector.shape_cast %74 : vector<16xf32> to vector<16x1xf32>
    %76 = vector.broadcast %75 : vector<16x1xf32> to vector<16x16xf32>
    %77 = arith.subf %73, %76 : vector<16x16xf32>
    %78 = math.exp %77 : vector<16x16xf32>
    %cst_26 = arith.constant dense<0.000000e+00> : vector<16xf32>
    %79 = vector.multi_reduction <add>, %78, %cst_26 [1] : vector<16x16xf32> to vector<16xf32>
    %80 = vector.shape_cast %79 : vector<16xf32> to vector<16x1xf32>
    %81 = tpu.reciprocal %80 {approx = true} : vector<16x1xf32> -> vector<16x1xf32>
    %82 = vector.broadcast %81 : vector<16x1xf32> to vector<16x16xf32>
    %83 = arith.mulf %78, %82 : vector<16x16xf32>
    %cst_27 = arith.constant dense<0.000000e+00> : vector<16x16xf32>
    %84 = tpu.matmul %83, %71, %cst_27 {dimension_numbers = #tpu.dot_dimension_numbers<[1], [0], [0], [1], [0, 0, 1, 1], [], []>} : vector<16x16xf32>, vector<16x16xf32>, vector<16x16xf32> -> vector<16x16xf32>
    %85 = vector.extract_strided_slice %32 {offsets = [0, 48], sizes = [16, 16], strides = [1, 1]} : vector<16x64xf32> to vector<16x16xf32>
    %86 = vector.extract_strided_slice %35 {offsets = [0, 48], sizes = [16, 16], strides = [1, 1]} : vector<16x64xf32> to vector<16x16xf32>
    %87 = vector.extract_strided_slice %26 {offsets = [0, 48], sizes = [16, 16], strides = [1, 1]} : vector<16x64xf32> to vector<16x16xf32>
    %cst_28 = arith.constant dense<0.000000e+00> : vector<16x16xf32>
    %88 = tpu.matmul %85, %86, %cst_28 {dimension_numbers = #tpu.dot_dimension_numbers<[1], [1], [0], [0], [0, 0, 1, 0], [], []>} : vector<16x16xf32>, vector<16x16xf32>, vector<16x16xf32> -> vector<16x16xf32>
    %89 = arith.addf %88, %36 : vector<16x16xf32>
    %cst_29 = arith.constant dense<0xFF800000> : vector<16xf32>
    %90 = vector.multi_reduction <maximumf>, %89, %cst_29 [1] : vector<16x16xf32> to vector<16xf32>
    %91 = vector.shape_cast %90 : vector<16xf32> to vector<16x1xf32>
    %92 = vector.broadcast %91 : vector<16x1xf32> to vector<16x16xf32>
    %93 = arith.subf %89, %92 : vector<16x16xf32>
    %94 = math.exp %93 : vector<16x16xf32>
    %cst_30 = arith.constant dense<0.000000e+00> : vector<16xf32>
    %95 = vector.multi_reduction <add>, %94, %cst_30 [1] : vector<16x16xf32> to vector<16xf32>
    %96 = vector.shape_cast %95 : vector<16xf32> to vector<16x1xf32>
    %97 = tpu.reciprocal %96 {approx = true} : vector<16x1xf32> -> vector<16x1xf32>
    %98 = vector.broadcast %97 : vector<16x1xf32> to vector<16x16xf32>
    %99 = arith.mulf %94, %98 : vector<16x16xf32>
    %cst_31 = arith.constant dense<0.000000e+00> : vector<16x16xf32>
    %100 = tpu.matmul %99, %87, %cst_31 {dimension_numbers = #tpu.dot_dimension_numbers<[1], [0], [0], [1], [0, 0, 1, 1], [], []>} : vector<16x16xf32>, vector<16x16xf32>, vector<16x16xf32> -> vector<16x16xf32>
    %101 = tpu.concatenate %52, %68, %84, %100 in 1 : vector<16x16xf32>, vector<16x16xf32>, vector<16x16xf32>, vector<16x16xf32> -> vector<16x64xf32>
    %cst_32 = arith.constant 5.000000e-01 : f32
    %102 = vector.broadcast %cst_32 : f32 to vector<16x256xf32>
    %103 = arith.mulf %102, %27 : vector<16x256xf32>
    %cst_33 = arith.constant 0.707106769 : f32
    %104 = vector.broadcast %cst_33 : f32 to vector<16x256xf32>
    %105 = arith.mulf %27, %104 : vector<16x256xf32>
    %106 = math.erf %105 : vector<16x256xf32>
    %cst_34 = arith.constant 1.000000e+00 : f32
    %107 = vector.broadcast %cst_34 : f32 to vector<16x256xf32>
    %108 = arith.addf %107, %106 : vector<16x256xf32>
    %109 = arith.mulf %103, %108 : vector<16x256xf32>
    %c0_35 = arith.constant 0 : index
    %c0_36 = arith.constant 0 : index
    %110 = vector.load %arg3[%c0_35, %c0_36] : memref<64x64xf32, #tpu.memory_space<vmem>>, vector<64x64xf32>
    %cst_37 = arith.constant dense<0.000000e+00> : vector<16x64xf32>
    %111 = tpu.matmul %101, %110, %cst_37 {dimension_numbers = #tpu.dot_dimension_numbers<[1], [0], [0], [1], [0, 0, 1, 1], [], []>} : vector<16x64xf32>, vector<64x64xf32>, vector<16x64xf32> -> vector<16x64xf32>
    %c0_38 = arith.constant 0 : index
    %c0_39 = arith.constant 0 : index
    %112 = vector.load %arg4[%c0_38, %c0_39] : memref<256x64xf32, #tpu.memory_space<vmem>>, vector<256x64xf32>
    %cst_40 = arith.constant dense<0.000000e+00> : vector<16x64xf32>
    %113 = tpu.matmul %109, %112, %cst_40 {dimension_numbers = #tpu.dot_dimension_numbers<[1], [0], [0], [1], [0, 0, 1, 1], [], []>} : vector<16x256xf32>, vector<256x64xf32>, vector<16x64xf32> -> vector<16x64xf32>
    %114 = arith.addf %111, %113 : vector<16x64xf32>
    %115 = arith.addf %114, %0 : vector<16x64xf32>
    %c0_41 = arith.constant 0 : index
    %c0_42 = arith.constant 0 : index
    %116 = vector.load %arg5[%c0_41, %c0_42] : memref<1x64xf32, #tpu.memory_space<vmem>>, vector<1x64xf32>
    %117 = vector.broadcast %116 : vector<1x64xf32> to vector<16x64xf32>
    %118 = arith.addf %115, %117 : vector<16x64xf32>
    %c0_43 = arith.constant 0 : index
    %c0_44 = arith.constant 0 : index
    %119 = vector.load %arg9[%c0_43, %c0_44] : memref<16x64xf32, #tpu.memory_space<vmem>>, vector<16x64xf32>
    tpu.vector_store %arg9[%c0_43, %c0_44], %118 {strides = array<i32>} : memref<16x64xf32, #tpu.memory_space<vmem>>, vector<16x64xf32>,
    return
  }
}

</mosaic_0001>

<llo_original>
// kernel: block_forward.1
$region0: #{block_forward.1}
  #allocation0 [shape = 'u32[]', space=smem, size = 0x4, offset = 0x4, fixed_abs, tag = 'smem constant byte address 0x4 - core index']
  #allocation1 [shape = 'u32[144,128]{1,0:T(1,128)}', space=vmem, size = 0x12000, scoped, tag = 'internal scratch']
  %s0 = inlined_call_operand.vmem [shape: f32[16,64], index: 0, kind: input, shape index: {}]
  %s1 = inlined_call_operand.vmem [shape: f32[64,896], index: 1, kind: input, shape index: {}]
  %s2 = inlined_call_operand.vmem [shape: f32[1,896], index: 2, kind: input, shape index: {}]
  %s3 = inlined_call_operand.vmem [shape: f32[64,64], index: 3, kind: input, shape index: {}]
  %s4 = inlined_call_operand.vmem [shape: f32[256,64], index: 4, kind: input, shape index: {}]
  %s5 = inlined_call_operand.vmem [shape: f32[1,64], index: 5, kind: input, shape index: {}]
  %s6 = inlined_call_operand.vmem [shape: f32[16,64], index: 6, kind: input, shape index: {}]
  %s7 = inlined_call_operand.vmem [shape: f32[16,64], index: 7, kind: input, shape index: {}]
  %s8 = inlined_call_operand.vmem [shape: f32[16,16], index: 8, kind: input, shape index: {}]
  %s9 = inlined_call_operand.hbm [shape: f32[16,64], index: 9, kind: output, shape index: {}]
  %s10 = sld [smem:[#allocation0]]
  $region46: #{block_forward.1} parent=0
    _
  %s12 = ssub.s32 1, %s10
  %s13 = scalar_select 0, %s12, %s10
  $region1: #{block_forward.1} parent=0
    #allocation2 [shape = 'u8[8192]{0}', space=vmem, size = 0x2000, scoped, tag = 'output window, operand 0, single buffered']
    #allocation3 [shape = 's32[1]{0}', space=sflag, size = 0x4, scoped, tag = 'scoped memory for block_forward.1']
    %14 = vsyncpa [#allocation3], 0
    // Predicated region
    $region2: #{block_forward.1} parent=1 // pred_check
      _
    $region3: #{block_forward.1} parent=1 // pred_check_branch
      %16 = sbr.rel (0) target = $region5
    $region4: #{block_forward.1} parent=1 // pred_region
      _
    $region5: #{block_forward.1} parent=1 // pred_fallthru
      _
    // Predicated region
    $region6: #{block_forward.1} parent=1 // pred_check
      _
    $region7: #{block_forward.1} parent=1 // pred_check_branch
      %18 = sbr.rel (0) target = $region9
    $region8: #{block_forward.1} parent=1 // pred_region
      _
    $region9: #{block_forward.1} parent=1 // pred_fallthru
      _
    // Predicated region
    $region10: #{block_forward.1} parent=1 // pred_check
      _
    $region11: #{block_forward.1} parent=1 // pred_check_branch
      %20 = sbr.rel (0) target = $region13
    $region12: #{block_forward.1} parent=1 // pred_region
      _
    $region13: #{block_forward.1} parent=1 // pred_fallthru
      _
    // Predicated region
    $region14: #{block_forward.1} parent=1 // pred_check
      _
    $region15: #{block_forward.1} parent=1 // pred_check_branch
      %22 = sbr.rel (0) target = $region17
    $region16: #{block_forward.1} parent=1 // pred_region
      _
    $region17: #{block_forward.1} parent=1 // pred_fallthru
      _
    // Predicated region
    $region18: #{block_forward.1} parent=1 // pred_check
      _
    $region19: #{block_forward.1} parent=1 // pred_check_branch
      %24 = sbr.rel (0) target = $region21
    $region20: #{block_forward.1} parent=1 // pred_region
      _
    $region21: #{block_forward.1} parent=1 // pred_fallthru
      _
    // Predicated region
    $region22: #{block_forward.1} parent=1 // pred_check
      _
    $region23: #{block_forward.1} parent=1 // pred_check_branch
      %26 = sbr.rel (0) target = $region25
    $region24: #{block_forward.1} parent=1 // pred_region
      _
    $region25: #{block_forward.1} parent=1 // pred_fallthru
      _
    // Predicated region
    $region26: #{block_forward.1} parent=1 // pred_check
      _
    $region27: #{block_forward.1} parent=1 // pred_check_branch
      %28 = sbr.rel (0) target = $region29
    $region28: #{block_forward.1} parent=1 // pred_region
      _
    $region29: #{block_forward.1} parent=1 // pred_fallthru
      _
    // Predicated region
    $region30: #{block_forward.1} parent=1 // pred_check
      _
    $region31: #{block_forward.1} parent=1 // pred_check_branch
      %30 = sbr.rel (0) target = $region33
    $region32: #{block_forward.1} parent=1 // pred_region
      _
    $region33: #{block_forward.1} parent=1 // pred_fallthru
      _
    // Predicated region
    $region34: #{block_forward.1} parent=1 // pred_check
      _
    $region35: #{block_forward.1} parent=1 // pred_check_branch
      %32 = sbr.rel (0) target = $region37
    $region36: #{block_forward.1} parent=1 // pred_region
      _
    $region37: #{block_forward.1} parent=1 // pred_fallthru
      _
    %v33 = vld [vmem:[%s0] sm:$0xff]
    %v34 = vld [vmem:[%s0 + $0x8] sm:$0xff]
    %vm35 = vcmask 523264
    %v36 = vsel %vm35, %v33, 0.0
    %37 = vadd.xlane.f32.xlu0 %v36
    %v38 = vpop.xlane.xlu0 %37
    %v39 = vsel %vm35, %v34, 0.0
    %40 = vadd.xlane.f32.xlu0 %v39
    %v41 = vpop.xlane.xlu0 %40
    %v42 = vrcp.pop 64.0
    %v43 = vmul.f32 %v38, %v42
    %v44 = vmul.f32 %v41, %v42
    %v45 = vsub.f32 %v33, %v43
    %v46 = vsub.f32 %v34, %v44
    %v47 = vmul.f32 %v45, %v45
    %v48 = vmul.f32 %v46, %v46
    %v49 = vsel %vm35, %v47, 0.0
    %50 = vadd.xlane.f32.xlu0 %v49
    %v51 = vpop.xlane.xlu0 %50
    %v52 = vsel %vm35, %v48, 0.0
    %53 = vadd.xlane.f32.xlu0 %v52
    %v54 = vpop.xlane.xlu0 %53
    %v55 = vmul.f32 %v51, %v42
    %v56 = vmul.f32 %v54, %v42
    %v57 = vadd.f32 %v55, 1e-05
    %v58 = vadd.f32 %v56, 1e-05
    %v59 = vrsqrt.pop %v57
    %v60 = vrsqrt.pop %v58
    %v61 = vmul.f32 %v45, %v59
    %v62 = vmul.f32 %v46, %v60
    %v63 = vld [vmem:[%s1] sm:$0xff]
    %v64 = vld [vmem:[%s1 + $0x8] sm:$0xff]
    %v65 = vld [vmem:[%s1 + $0x10] sm:$0xff]
    %v66 = vld [vmem:[%s1 + $0x18] sm:$0xff]
    %v67 = vld [vmem:[%s1 + $0x20] sm:$0xff]
    %v68 = vld [vmem:[%s1 + $0x28] sm:$0xff]
    %v69 = vld [vmem:[%s1 + $0x30] sm:$0xff]
    %v70 = vld [vmem:[%s1 + $0x38] sm:$0xff]
    %v71 = vld [vmem:[%s1 + $0x40] sm:$0xff]
    %v72 = vld [vmem:[%s1 + $0x48] sm:$0xff]
    %v73 = vld [vmem:[%s1 + $0x50] sm:$0xff]
    %v74 = vld [vmem:[%s1 + $0x58] sm:$0xff]
    %v75 = vld [vmem:[%s1 + $0x60] sm:$0xff]
    %v76 = vld [vmem:[%s1 + $0x68] sm:$0xff]
    %v77 = vld [vmem:[%s1 + $0x70] sm:$0xff]
    %v78 = vld [vmem:[%s1 + $0x78] sm:$0xff]
    %v79 = vld [vmem:[%s1 + $0x80] sm:$0xff]
    %v80 = vld [vmem:[%s1 + $0x88] sm:$0xff]
    %v81 = vld [vmem:[%s1 + $0x90] sm:$0xff]
    %v82 = vld [vmem:[%s1 + $0x98] sm:$0xff]
    %v83 = vld [vmem:[%s1 + $0xa0] sm:$0xff]
    %v84 = vld [vmem:[%s1 + $0xa8] sm:$0xff]
    %v85 = vld [vmem:[%s1 + $0xb0] sm:$0xff]
    %v86 = vld [vmem:[%s1 + $0xb8] sm:$0xff]
    %v87 = vld [vmem:[%s1 + $0xc0] sm:$0xff]
    %v88 = vld [vmem:[%s1 + $0xc8] sm:$0xff]
    %v89 = vld [vmem:[%s1 + $0xd0] sm:$0xff]
    %v90 = vld [vmem:[%s1 + $0xd8] sm:$0xff]
    %v91 = vld [vmem:[%s1 + $0xe0] sm:$0xff]
    %v92 = vld [vmem:[%s1 + $0xe8] sm:$0xff]
    %v93 = vld [vmem:[%s1 + $0xf0] sm:$0xff]
    %v94 = vld [vmem:[%s1 + $0xf8] sm:$0xff]
    %v95 = vld [vmem:[%s1 + $0x100] sm:$0xff]
    %v96 = vld [vmem:[%s1 + $0x108] sm:$0xff]
    %v97 = vld [vmem:[%s1 + $0x110] sm:$0xff]
    %v98 = vld [vmem:[%s1 + $0x118] sm:$0xff]
    %v99 = vld [vmem:[%s1 + $0x120] sm:$0xff]
    %v100 = vld [vmem:[%s1 + $0x128] sm:$0xff]
    %v101 = vld [vmem:[%s1 + $0x130] sm:$0xff]
    %v102 = vld [vmem:[%s1 + $0x138] sm:$0xff]
    %v103 = vld [vmem:[%s1 + $0x140] sm:$0xff]
    %v104 = vld [vmem:[%s1 + $0x148] sm:$0xff]
    %v105 = vld [vmem:[%s1 + $0x150] sm:$0xff]
    %v106 = vld [vmem:[%s1 + $0x158] sm:$0xff]
    %v107 = vld [vmem:[%s1 + $0x160] sm:$0xff]
    %v108 = vld [vmem:[%s1 + $0x168] sm:$0xff]
    %v109 = vld [vmem:[%s1 + $0x170] sm:$0xff]
    %v110 = vld [vmem:[%s1 + $0x178] sm:$0xff]
    %v111 = vld [vmem:[%s1 + $0x180] sm:$0xff]
    %v112 = vld [vmem:[%s1 + $0x188] sm:$0xff]
    %v113 = vld [vmem:[%s1 + $0x190] sm:$0xff]
    %v114 = vld [vmem:[%s1 + $0x198] sm:$0xff]
    %v115 = vld [vmem:[%s1 + $0x1a0] sm:$0xff]
    %v116 = vld [vmem:[%s1 + $0x1a8] sm:$0xff]
    %v117 = vld [vmem:[%s1 + $0x1b0] sm:$0xff]
    %v118 = vld [vmem:[%s1 + $0x1b8] sm:$0xff]
    %v119 = vld [vmem:[%s2] sm:$0xff]
    %v121 = vlaneseq
    %v122 = vshrl.u32 %v121, 7
    %v123 = vsub.s32 0, %v122
    %v124 = vrot.slane %v119, %v123
    %v125 = vlaneseq
    %v126 = vshrl.u32 %v125, 7
    %v127 = vsub.s32 1, %v126
    %v128 = vrot.slane %v119, %v127
    %v129 = vlaneseq
    %v130 = vshrl.u32 %v129, 7
    %v131 = vsub.s32 2, %v130
    %v132 = vrot.slane %v119, %v131
    %v133 = vlaneseq
    %v134 = vshrl.u32 %v133, 7
    %v135 = vsub.s32 3, %v134
    %v136 = vrot.slane %v119, %v135
    %v137 = vlaneseq
    %v138 = vshrl.u32 %v137, 7
    %v139 = vsub.s32 4, %v138
    %v140 = vrot.slane %v119, %v139
    %v141 = vlaneseq
    %v142 = vshrl.u32 %v141, 7
    %v143 = vsub.s32 5, %v142
    %v144 = vrot.slane %v119, %v143
    %v145 = vlaneseq
    %v146 = vshrl.u32 %v145, 7
    %v147 = vsub.s32 6, %v146
    %v148 = vrot.slane %v119, %v147
    %v157 = vsel %vm35, %v61, 0
    %v160 = vsel %vm35, %v62, 0
    %162 = vmatprep.subr.mxu0 0.0
    %163 = vmatpush1.msra.mxu0 0.0
    %164 = vmatprep.subr.mxu0 0.0
    %165 = vmatpush1.msra.mxu0 0.0
    %166 = vmatprep.subr.mxu0 0.0
    %167 = vmatpush1.msra.mxu0 0.0
    %168 = vmatprep.subr.mxu0 0.0
    %169 = vmatpush1.msra.mxu0 0.0
    %170 = vmatprep.subr.mxu0 0.0
    %171 = vmatpush1.msra.mxu0 0.0
    %172 = vmatprep.subr.mxu0 0.0
    %173 = vmatpush1.msra.mxu0 0.0
    %174 = vmatprep.subr.mxu0 0.0
    %175 = vmatpush1.msra.mxu0 0.0
    %176 = vmatprep.subr.mxu0 0.0
    %177 = vmatpush1.msra.mxu0 0.0
    %178 = vmatprep.subr.mxu0 %v113
    %179 = vmatpush1.msra.mxu0 %v112
    %180 = vmatprep.subr.mxu0 %v106
    %181 = vmatpush1.msra.mxu0 %v105
    %182 = vmatprep.subr.mxu0 %v99
    %183 = vmatpush1.msra.mxu0 %v98
    %184 = vmatprep.subr.mxu0 %v92
    %185 = vmatpush1.msra.mxu0 %v91
    %186 = vmatprep.subr.mxu0 %v85
    %187 = vmatpush1.msra.mxu0 %v84
    %188 = vmatprep.subr.mxu0 %v78
    %189 = vmatpush1.msra.mxu0 %v77
    %190 = vmatprep.subr.mxu0 %v71
    %191 = vmatpush1.msra.mxu0 %v70
    %192 = vmatprep.subr.mxu0 %v64
    %193 = vmatpush1.msra.mxu0 %v63
    %194 = vmatprep.subr.mxu0 0.0
    %195 = vmatpush2.msra.mxu0 0.0
    %196 = vmatprep.subr.mxu0 0.0
    %197 = vmatpush2.msra.mxu0 0.0
    %198 = vmatprep.subr.mxu0 0.0
    %199 = vmatpush2.msra.mxu0 0.0
    %200 = vmatprep.subr.mxu0 0.0
    %201 = vmatpush2.msra.mxu0 0.0
    %202 = vmatprep.subr.mxu0 0.0
    %203 = vmatpush2.msra.mxu0 0.0
    %204 = vmatprep.subr.mxu0 0.0
    %205 = vmatpush2.msra.mxu0 0.0
    %206 = vmatprep.subr.mxu0 0.0
    %207 = vmatpush2.msra.mxu0 0.0
    %208 = vmatprep.subr.mxu0 0.0
    %209 = vmatpush2.msra.mxu0 0.0
    %210 = vmatprep.subr.mxu0 0.0
    %211 = vmatpush2.msra.mxu0 0.0
    %212 = vmatprep.subr.mxu0 0.0
    %213 = vmatpush2.msra.mxu0 0.0
    %214 = vmatprep.subr.mxu0 0.0
    %215 = vmatpush2.msra.mxu0 0.0
    %216 = vmatprep.subr.mxu0 0.0
    %217 = vmatpush2.msra.mxu0 0.0
    %218 = vmatprep.subr.mxu0 0.0
    %219 = vmatpush2.msra.mxu0 0.0
    %220 = vmatprep.subr.mxu0 0.0
    %221 = vmatpush2.msra.mxu0 0.0
    %222 = vmatprep.subr.mxu0 0.0
    %223 = vmatpush2.msra.mxu0 0.0
    %224 = vmatprep.subr.mxu0 0.0
    %225 = vmatpush2.msra.mxu0 0.0
    %226 = vmatprep.mubr.f32.mxu0 0.0
    %227 = vmatmul.mubr.f32.gmra.mxu0 %v157
    %v228 = vpop.f32.mrf.mxu0
    %v229 = vadd.f32 %v124, %v228
    %v230 = vpop.f32.mrf.mxu0
    %v231 = vadd.f32 %v128, %v230
    %232 = vmatprep.mubr.f32.mxu0 0.0
    %233 = vmatmul.mubr.f32.gmra.mxu0 %v160
    %v234 = vpop.f32.mrf.mxu0
    %v235 = vadd.f32 %v124, %v234
    %v236 = vpop.f32.mrf.mxu0
    %v237 = vadd.f32 %v128, %v236
    %238 = vdwg.mxu0
    %239 = vmatprep.subr.mxu0 0.0
    %240 = vmatpush1.msra.mxu0 0.0
    %241 = vmatprep.subr.mxu0 0.0
    %242 = vmatpush1.msra.mxu0 0.0
    %243 = vmatprep.subr.mxu0 0.0
    %244 = vmatpush1.msra.mxu0 0.0
    %245 = vmatprep.subr.mxu0 0.0
    %246 = vmatpush1.msra.mxu0 0.0
    %247 = vmatprep.subr.mxu0 0.0
    %248 = vmatpush1.msra.mxu0 0.0
    %249 = vmatprep.subr.mxu0 0.0
    %250 = vmatpush1.msra.mxu0 0.0
    %251 = vmatprep.subr.mxu0 0.0
    %252 = vmatpush1.msra.mxu0 0.0
    %253 = vmatprep.subr.mxu0 0.0
    %254 = vmatpush1.msra.mxu0 0.0
    %255 = vmatprep.subr.mxu0 %v115
    %256 = vmatpush1.msra.mxu0 %v114
    %257 = vmatprep.subr.mxu0 %v108
    %258 = vmatpush1.msra.mxu0 %v107
    %259 = vmatprep.subr.mxu0 %v101
    %260 = vmatpush1.msra.mxu0 %v100
    %261 = vmatprep.subr.mxu0 %v94
    %262 = vmatpush1.msra.mxu0 %v93
    %263 = vmatprep.subr.mxu0 %v87
    %264 = vmatpush1.msra.mxu0 %v86
    %265 = vmatprep.subr.mxu0 %v80
    %266 = vmatpush1.msra.mxu0 %v79
    %267 = vmatprep.subr.mxu0 %v73
    %268 = vmatpush1.msra.mxu0 %v72
    %269 = vmatprep.subr.mxu0 %v66
    %270 = vmatpush1.msra.mxu0 %v65
    %271 = vmatprep.subr.mxu0 0.0
    %272 = vmatpush2.msra.mxu0 0.0
    %273 = vmatprep.subr.mxu0 0.0
    %274 = vmatpush2.msra.mxu0 0.0
    %275 = vmatprep.subr.mxu0 0.0
    %276 = vmatpush2.msra.mxu0 0.0
    %277 = vmatprep.subr.mxu0 0.0
    %278 = vmatpush2.msra.mxu0 0.0
    %279 = vmatprep.subr.mxu0 0.0
    %280 = vmatpush2.msra.mxu0 0.0
    %281 = vmatprep.subr.mxu0 0.0
    %282 = vmatpush2.msra.mxu0 0.0
    %283 = vmatprep.subr.mxu0 0.0
    %284 = vmatpush2.msra.mxu0 0.0
    %285 = vmatprep.subr.mxu0 0.0
    %286 = vmatpush2.msra.mxu0 0.0
    %287 = vmatprep.subr.mxu0 0.0
    %288 = vmatpush2.msra.mxu0 0.0
    %289 = vmatprep.subr.mxu0 0.0
    %290 = vmatpush2.msra.mxu0 0.0
    %291 = vmatprep.subr.mxu0 0.0
    %292 = vmatpush2.msra.mxu0 0.0
    %293 = vmatprep.subr.mxu0 0.0
    %294 = vmatpush2.msra.mxu0 0.0
    %295 = vmatprep.subr.mxu0 0.0
    %296 = vmatpush2.msra.mxu0 0.0
    %297 = vmatprep.subr.mxu0 0.0
    %298 = vmatpush2.msra.mxu0 0.0
    %299 = vmatprep.subr.mxu0 0.0
    %300 = vmatpush2.msra.mxu0 0.0
    %301 = vmatprep.subr.mxu0 0.0
    %302 = vmatpush2.msra.mxu0 0.0
    %303 = vmatprep.mubr.f32.mxu0 0.0
    %304 = vmatmul.mubr.f32.gmra.mxu0 %v157
    %v305 = vpop.f32.mrf.mxu0
    %v306 = vadd.f32 %v132, %v305
    %v307 = vpop.f32.mrf.mxu0
    %v308 = vadd.f32 %v136, %v307
    %309 = vmatprep.mubr.f32.mxu0 0.0
    %310 = vmatmul.mubr.f32.gmra.mxu0 %v160
    %v311 = vpop.f32.mrf.mxu0
    %v312 = vadd.f32 %v132, %v311
    %v313 = vpop.f32.mrf.mxu0
    %v314 = vadd.f32 %v136, %v313
    %315 = vdwg.mxu0
    %316 = vmatprep.subr.mxu0 0.0
    %317 = vmatpush1.msra.mxu0 0.0
    %318 = vmatprep.subr.mxu0 0.0
    %319 = vmatpush1.msra.mxu0 0.0
    %320 = vmatprep.subr.mxu0 0.0
    %321 = vmatpush1.msra.mxu0 0.0
    %322 = vmatprep.subr.mxu0 0.0
    %323 = vmatpush1.msra.mxu0 0.0
    %324 = vmatprep.subr.mxu0 0.0
    %325 = vmatpush1.msra.mxu0 0.0
    %326 = vmatprep.subr.mxu0 0.0
    %327 = vmatpush1.msra.mxu0 0.0
    %328 = vmatprep.subr.mxu0 0.0
    %329 = vmatpush1.msra.mxu0 0.0
    %330 = vmatprep.subr.mxu0 0.0
    %331 = vmatpush1.msra.mxu0 0.0
    %332 = vmatprep.subr.mxu0 %v117
    %333 = vmatpush1.msra.mxu0 %v116
    %334 = vmatprep.subr.mxu0 %v110
    %335 = vmatpush1.msra.mxu0 %v109
    %336 = vmatprep.subr.mxu0 %v103
    %337 = vmatpush1.msra.mxu0 %v102
    %338 = vmatprep.subr.mxu0 %v96
    %339 = vmatpush1.msra.mxu0 %v95
    %340 = vmatprep.subr.mxu0 %v89
    %341 = vmatpush1.msra.mxu0 %v88
    %342 = vmatprep.subr.mxu0 %v82
    %343 = vmatpush1.msra.mxu0 %v81
    %344 = vmatprep.subr.mxu0 %v75
    %345 = vmatpush1.msra.mxu0 %v74
    %346 = vmatprep.subr.mxu0 %v68
    %347 = vmatpush1.msra.mxu0 %v67
    %348 = vmatprep.subr.mxu0 0.0
    %349 = vmatpush2.msra.mxu0 0.0
    %350 = vmatprep.subr.mxu0 0.0
    %351 = vmatpush2.msra.mxu0 0.0
    %352 = vmatprep.subr.mxu0 0.0
    %353 = vmatpush2.msra.mxu0 0.0
    %354 = vmatprep.subr.mxu0 0.0
    %355 = vmatpush2.msra.mxu0 0.0
    %356 = vmatprep.subr.mxu0 0.0
    %357 = vmatpush2.msra.mxu0 0.0
    %358 = vmatprep.subr.mxu0 0.0
    %359 = vmatpush2.msra.mxu0 0.0
    %360 = vmatprep.subr.mxu0 0.0
    %361 = vmatpush2.msra.mxu0 0.0
    %362 = vmatprep.subr.mxu0 0.0
    %363 = vmatpush2.msra.mxu0 0.0
    %364 = vmatprep.subr.mxu0 0.0
    %365 = vmatpush2.msra.mxu0 0.0
    %366 = vmatprep.subr.mxu0 0.0
    %367 = vmatpush2.msra.mxu0 0.0
    %368 = vmatprep.subr.mxu0 0.0
    %369 = vmatpush2.msra.mxu0 0.0
    %370 = vmatprep.subr.mxu0 0.0
    %371 = vmatpush2.msra.mxu0 0.0
    %372 = vmatprep.subr.mxu0 0.0
    %373 = vmatpush2.msra.mxu0 0.0
    %374 = vmatprep.subr.mxu0 0.0
    %375 = vmatpush2.msra.mxu0 0.0
    %376 = vmatprep.subr.mxu0 0.0
    %377 = vmatpush2.msra.mxu0 0.0
    %378 = vmatprep.subr.mxu0 0.0
    %379 = vmatpush2.msra.mxu0 0.0
    %380 = vmatprep.mubr.f32.mxu0 0.0
    %381 = vmatmul.mubr.f32.gmra.mxu0 %v157
    %v382 = vpop.f32.mrf.mxu0
    %v383 = vadd.f32 %v140, %v382
    %v384 = vpop.f32.mrf.mxu0
    %v385 = vadd.f32 %v144, %v384
    %386 = vmatprep.mubr.f32.mxu0 0.0
    %387 = vmatmul.mubr.f32.gmra.mxu0 %v160
    %v388 = vpop.f32.mrf.mxu0
    %v389 = vadd.f32 %v140, %v388
    %v390 = vpop.f32.mrf.mxu0
    %v391 = vadd.f32 %v144, %v390
    %392 = vdwg.mxu0
    %393 = vmatprep.subr.mxu0 0.0
    %394 = vmatpush1.msra.mxu0 0.0
    %395 = vmatprep.subr.mxu0 0.0
    %396 = vmatpush1.msra.mxu0 0.0
    %397 = vmatprep.subr.mxu0 0.0
    %398 = vmatpush1.msra.mxu0 0.0
    %399 = vmatprep.subr.mxu0 0.0
    %400 = vmatpush1.msra.mxu0 0.0
    %401 = vmatprep.subr.mxu0 0.0
    %402 = vmatpush1.msra.mxu0 0.0
    %403 = vmatprep.subr.mxu0 0.0
    %404 = vmatpush1.msra.mxu0 0.0
    %405 = vmatprep.subr.mxu0 0.0
    %406 = vmatpush1.msra.mxu0 0.0
    %407 = vmatprep.subr.mxu0 0.0
    %408 = vmatpush1.msra.mxu0 0.0
    %409 = vmatprep.subr.mxu0 0.0
    %410 = vmatpush1.msra.mxu0 %v118
    %411 = vmatprep.subr.mxu0 0.0
    %412 = vmatpush1.msra.mxu0 %v111
    %413 = vmatprep.subr.mxu0 0.0
    %414 = vmatpush1.msra.mxu0 %v104
    %415 = vmatprep.subr.mxu0 0.0
    %416 = vmatpush1.msra.mxu0 %v97
    %417 = vmatprep.subr.mxu0 0.0
    %418 = vmatpush1.msra.mxu0 %v90
    %419 = vmatprep.subr.mxu0 0.0
    %420 = vmatpush1.msra.mxu0 %v83
    %421 = vmatprep.subr.mxu0 0.0
    %422 = vmatpush1.msra.mxu0 %v76
    %423 = vmatprep.subr.mxu0 0.0
    %424 = vmatpush1.msra.mxu0 %v69
    %425 = vmatprep.subr.mxu0 0.0
    %426 = vmatpush2.msra.mxu0 0.0
    %427 = vmatprep.subr.mxu0 0.0
    %428 = vmatpush2.msra.mxu0 0.0
    %429 = vmatprep.subr.mxu0 0.0
    %430 = vmatpush2.msra.mxu0 0.0
    %431 = vmatprep.subr.mxu0 0.0
    %432 = vmatpush2.msra.mxu0 0.0
    %433 = vmatprep.subr.mxu0 0.0
    %434 = vmatpush2.msra.mxu0 0.0
    %435 = vmatprep.subr.mxu0 0.0
    %436 = vmatpush2.msra.mxu0 0.0
    %437 = vmatprep.subr.mxu0 0.0
    %438 = vmatpush2.msra.mxu0 0.0
    %439 = vmatprep.subr.mxu0 0.0
    %440 = vmatpush2.msra.mxu0 0.0
    %441 = vmatprep.subr.mxu0 0.0
    %442 = vmatpush2.msra.mxu0 0.0
    %443 = vmatprep.subr.mxu0 0.0
    %444 = vmatpush2.msra.mxu0 0.0
    %445 = vmatprep.subr.mxu0 0.0
    %446 = vmatpush2.msra.mxu0 0.0
    %447 = vmatprep.subr.mxu0 0.0
    %448 = vmatpush2.msra.mxu0 0.0
    %449 = vmatprep.subr.mxu0 0.0
    %450 = vmatpush2.msra.mxu0 0.0
    %451 = vmatprep.subr.mxu0 0.0
    %452 = vmatpush2.msra.mxu0 0.0
    %453 = vmatprep.subr.mxu0 0.0
    %454 = vmatpush2.msra.mxu0 0.0
    %455 = vmatprep.subr.mxu0 0.0
    %456 = vmatpush2.msra.mxu0 0.0
    %457 = vmatprep.mubr.f32.mxu0 0.0
    %458 = vmatmul.mubr.f32.gmra.mxu0 %v157
    %v459 = vpop.f32.mrf.mxu0
    %v460 = vadd.f32 %v148, %v459
    %v461 = vpop.f32.mrf.mxu0
    %462 = vmatprep.mubr.f32.mxu0 0.0
    %463 = vmatmul.mubr.f32.gmra.mxu0 %v160
    %v464 = vpop.f32.mrf.mxu0
    %v465 = vadd.f32 %v148, %v464
    %v466 = vpop.f32.mrf.mxu0
    %467 = vdwg.mxu0
    %v468 = vld [vmem:[%s6] sm:$0xff]
    %v469 = vld [vmem:[%s6 + $0x8] sm:$0xff]
    %v470 = vld [vmem:[%s7] sm:$0xff]
    %v471 = vld [vmem:[%s7 + $0x8] sm:$0xff]
    %v472 = vmul.f32 %v229, %v468
    %v473 = vmul.f32 %v235, %v469
    %v474 = vmul.f32 %v231, %v470
    %v475 = vmul.f32 %v237, %v471
    %v476 = vadd.f32 %v472, %v474
    %v477 = vadd.f32 %v473, %v475
    %v478 = vmul.f32 %v306, %v468
    %v479 = vmul.f32 %v312, %v469
    %v480 = vmul.f32 %v308, %v470
    %v481 = vmul.f32 %v314, %v471
    %v482 = vadd.f32 %v478, %v480
    %v483 = vadd.f32 %v479, %v481
    %v484 = vld [vmem:[%s8] sm:$0xff]
    %v485 = vld [vmem:[%s8 + $0x8] sm:$0xff]
    %vm486 = vcmask 130048
    %v488 = vsel %vm486, %v476, 0
    %v491 = vsel %vm486, %v477, 0
    %v494 = vsel %vm486, %v482, 0
    %v497 = vsel %vm486, %v483, 0
    %499 = vmatprep.subr.mxu0 0.0
    %500 = vmatpush1.xpose.msra.mxu0 0.0
    %501 = vmatprep.subr.mxu0 0.0
    %502 = vmatpush1.xpose.msra.mxu0 0.0
    %503 = vmatprep.subr.mxu0 0.0
    %504 = vmatpush1.xpose.msra.mxu0 0.0
    %505 = vmatprep.subr.mxu0 0.0
    %506 = vmatpush1.xpose.msra.mxu0 0.0
    %507 = vmatprep.subr.mxu0 0.0
    %508 = vmatpush1.xpose.msra.mxu0 0.0
    %509 = vmatprep.subr.mxu0 0.0
    %510 = vmatpush1.xpose.msra.mxu0 0.0
    %511 = vmatprep.subr.mxu0 0.0
    %512 = vmatpush1.xpose.msra.mxu0 0.0
    %513 = vmatprep.subr.mxu0 0.0
    %514 = vmatpush1.xpose.msra.mxu0 0.0
    %515 = vmatprep.subr.mxu0 0.0
    %516 = vmatpush1.xpose.msra.mxu0 0.0
    %517 = vmatprep.subr.mxu0 0.0
    %518 = vmatpush1.xpose.msra.mxu0 0.0
    %519 = vmatprep.subr.mxu0 0.0
    %520 = vmatpush1.xpose.msra.mxu0 0.0
    %521 = vmatprep.subr.mxu0 0.0
    %522 = vmatpush1.xpose.msra.mxu0 0.0
    %523 = vmatprep.subr.mxu0 0.0
    %524 = vmatpush1.xpose.msra.mxu0 0.0
    %525 = vmatprep.subr.mxu0 0.0
    %526 = vmatpush1.xpose.msra.mxu0 0.0
    %527 = vmatprep.subr.mxu0 0.0
    %528 = vmatpush1.xpose.msra.mxu0 %v497
    %529 = vmatprep.subr.mxu0 0.0
    %530 = vmatpush1.xpose.msra.mxu0 %v494
    %531 = vmatprep.subr.mxu0 0.0
    %532 = vmatpush2.xpose.msra.mxu0 0.0
    %533 = vmatprep.subr.mxu0 0.0
    %534 = vmatpush2.xpose.msra.mxu0 0.0
    %535 = vmatprep.subr.mxu0 0.0
    %536 = vmatpush2.xpose.msra.mxu0 0.0
    %537 = vmatprep.subr.mxu0 0.0
    %538 = vmatpush2.xpose.msra.mxu0 0.0
    %539 = vmatprep.subr.mxu0 0.0
    %540 = vmatpush2.xpose.msra.mxu0 0.0
    %541 = vmatprep.subr.mxu0 0.0
    %542 = vmatpush2.xpose.msra.mxu0 0.0
    %543 = vmatprep.subr.mxu0 0.0
    %544 = vmatpush2.xpose.msra.mxu0 0.0
    %545 = vmatprep.subr.mxu0 0.0
    %546 = vmatpush2.xpose.msra.mxu0 0.0
    %547 = vmatprep.subr.mxu0 0.0
    %548 = vmatpush2.xpose.msra.mxu0 0.0
    %549 = vmatprep.subr.mxu0 0.0
    %550 = vmatpush2.xpose.msra.mxu0 0.0
    %551 = vmatprep.subr.mxu0 0.0
    %552 = vmatpush2.xpose.msra.mxu0 0.0
    %553 = vmatprep.subr.mxu0 0.0
    %554 = vmatpush2.xpose.msra.mxu0 0.0
    %555 = vmatprep.subr.mxu0 0.0
    %556 = vmatpush2.xpose.msra.mxu0 0.0
    %557 = vmatprep.subr.mxu0 0.0
    %558 = vmatpush2.xpose.msra.mxu0 0.0
    %559 = vmatprep.subr.mxu0 0.0
    %560 = vmatpush2.xpose.msra.mxu0 0.0
    %561 = vmatprep.subr.mxu0 0.0
    %562 = vmatpush2.xpose.msra.mxu0 0.0
    %563 = vmatprep.mubr.f32.mxu0 0.0
    %564 = vmatmul.mubr.f32.gmra.mxu0 %v488
    %v565 = vpop.f32.mrf.mxu0
    %v566 = vadd.f32 %v484, %v565
    %v567 = vpop.f32.mrf.mxu0
    %568 = vmatprep.mubr.f32.mxu0 0.0
    %569 = vmatmul.mubr.f32.gmra.mxu0 %v491
    %v570 = vpop.f32.mrf.mxu0
    %v571 = vadd.f32 %v485, %v570
    %v572 = vpop.f32.mrf.mxu0
    %573 = vdwg.mxu0
    %v574 = vsel %vm486, %v566, -inf
    %575 = vmax.xlane.f32.xlu0 %v574
    %v576 = vpop.xlane.xlu0 %575
    %v577 = vsel %vm486, %v571, -inf
    %578 = vmax.xlane.f32.xlu0 %v577
    %v579 = vpop.xlane.xlu0 %578
    %v580 = vsub.f32 %v566, %v576
    %v581 = vsub.f32 %v571, %v579
    %v582 = vmul.f32 %v580, 1.442695
    %v583 = vpow.pop %v582
    %v584 = vmul.f32 %v581, 1.442695
    %v585 = vpow.pop %v584
    %v586 = vsel %vm486, %v583, 0.0
    %587 = vadd.xlane.f32.xlu0 %v586
    %v588 = vpop.xlane.xlu0 %587
    %v589 = vsel %vm486, %v585, 0.0
    %590 = vadd.xlane.f32.xlu0 %v589
    %v591 = vpop.xlane.xlu0 %590
    %v592 = vrcp.pop %v588
    %v593 = vrcp.pop %v591
    %v594 = vmul.f32 %v583, %v592
    %v595 = vmul.f32 %v585, %v593
    %v597 = vsel %vm486, %v594, 0
    %v600 = vsel %vm486, %v595, 0
    %602 = vmatprep.subr.mxu0 0.0
    %603 = vmatpush1.msra.mxu0 0.0
    %604 = vmatprep.subr.mxu0 0.0
    %605 = vmatpush1.msra.mxu0 0.0
    %606 = vmatprep.subr.mxu0 0.0
    %607 = vmatpush1.msra.mxu0 0.0
    %608 = vmatprep.subr.mxu0 0.0
    %609 = vmatpush1.msra.mxu0 0.0
    %610 = vmatprep.subr.mxu0 0.0
    %611 = vmatpush1.msra.mxu0 0.0
    %612 = vmatprep.subr.mxu0 0.0
    %613 = vmatpush1.msra.mxu0 0.0
    %614 = vmatprep.subr.mxu0 0.0
    %615 = vmatpush1.msra.mxu0 0.0
    %616 = vmatprep.subr.mxu0 0.0
    %617 = vmatpush1.msra.mxu0 0.0
    %618 = vmatprep.subr.mxu0 0.0
    %619 = vmatpush1.msra.mxu0 0.0
    %620 = vmatprep.subr.mxu0 0.0
    %621 = vmatpush1.msra.mxu0 0.0
    %622 = vmatprep.subr.mxu0 0.0
    %623 = vmatpush1.msra.mxu0 0.0
    %624 = vmatprep.subr.mxu0 0.0
    %625 = vmatpush1.msra.mxu0 0.0
    %626 = vmatprep.subr.mxu0 0.0
    %627 = vmatpush1.msra.mxu0 0.0
    %628 = vmatprep.subr.mxu0 0.0
    %629 = vmatpush1.msra.mxu0 0.0
    %630 = vmatprep.subr.mxu0 0.0
    %631 = vmatpush1.msra.mxu0 %v389
    %632 = vmatprep.subr.mxu0 0.0
    %633 = vmatpush1.msra.mxu0 %v383
    %634 = vmatprep.subr.mxu0 0.0
    %635 = vmatpush2.msra.mxu0 0.0
    %636 = vmatprep.subr.mxu0 0.0
    %637 = vmatpush2.msra.mxu0 0.0
    %638 = vmatprep.subr.mxu0 0.0
    %639 = vmatpush2.msra.mxu0 0.0
    %640 = vmatprep.subr.mxu0 0.0
    %641 = vmatpush2.msra.mxu0 0.0
    %642 = vmatprep.subr.mxu0 0.0
    %643 = vmatpush2.msra.mxu0 0.0
    %644 = vmatprep.subr.mxu0 0.0
    %645 = vmatpush2.msra.mxu0 0.0
    %646 = vmatprep.subr.mxu0 0.0
    %647 = vmatpush2.msra.mxu0 0.0
    %648 = vmatprep.subr.mxu0 0.0
    %649 = vmatpush2.msra.mxu0 0.0
    %650 = vmatprep.subr.mxu0 0.0
    %651 = vmatpush2.msra.mxu0 0.0
    %652 = vmatprep.subr.mxu0 0.0
    %653 = vmatpush2.msra.mxu0 0.0
    %654 = vmatprep.subr.mxu0 0.0
    %655 = vmatpush2.msra.mxu0 0.0
    %656 = vmatprep.subr.mxu0 0.0
    %657 = vmatpush2.msra.mxu0 0.0
    %658 = vmatprep.subr.mxu0 0.0
    %659 = vmatpush2.msra.mxu0 0.0
    %660 = vmatprep.subr.mxu0 0.0
    %661 = vmatpush2.msra.mxu0 0.0
    %662 = vmatprep.subr.mxu0 0.0
    %663 = vmatpush2.msra.mxu0 0.0
    %664 = vmatprep.subr.mxu0 0.0
    %665 = vmatpush2.msra.mxu0 0.0
    %666 = vmatprep.mubr.f32.mxu0 0.0
    %667 = vmatmul.mubr.f32.gmra.mxu0 %v597
    %v668 = vpop.f32.mrf.mxu0
    %v669 = vadd.f32 0.0, %v668
    %v670 = vpop.f32.mrf.mxu0
    %671 = vmatprep.mubr.f32.mxu0 0.0
    %672 = vmatmul.mubr.f32.gmra.mxu0 %v600
    %v673 = vpop.f32.mrf.mxu0
    %v674 = vadd.f32 0.0, %v673
    %v675 = vpop.f32.mrf.mxu0
    %676 = vdwg.mxu0
    %677 = vrot.lane.b32.xlu0 %v476, 112
    %v678 = vpop.permute.xlu0 %677
    %679 = vrot.lane.b32.xlu0 %v477, 112
    %v680 = vpop.permute.xlu0 %679
    %681 = vrot.lane.b32.xlu0 %v482, 112
    %v682 = vpop.permute.xlu0 %681
    %683 = vrot.lane.b32.xlu0 %v483, 112
    %v684 = vpop.permute.xlu0 %683
    %v685 = vsel %vm486, %v678, 0
    %v687 = vsel %vm486, %v680, 0
    %v689 = vsel %vm486, %v682, 0
    %v691 = vsel %vm486, %v684, 0
    %693 = vmatprep.subr.mxu0 0.0
    %694 = vmatpush1.xpose.msra.mxu0 0.0
    %695 = vmatprep.subr.mxu0 0.0
    %696 = vmatpush1.xpose.msra.mxu0 0.0
    %697 = vmatprep.subr.mxu0 0.0
    %698 = vmatpush1.xpose.msra.mxu0 0.0
    %699 = vmatprep.subr.mxu0 0.0
    %700 = vmatpush1.xpose.msra.mxu0 0.0
    %701 = vmatprep.subr.mxu0 0.0
    %702 = vmatpush1.xpose.msra.mxu0 0.0
    %703 = vmatprep.subr.mxu0 0.0
    %704 = vmatpush1.xpose.msra.mxu0 0.0
    %705 = vmatprep.subr.mxu0 0.0
    %706 = vmatpush1.xpose.msra.mxu0 0.0
    %707 = vmatprep.subr.mxu0 0.0
    %708 = vmatpush1.xpose.msra.mxu0 0.0
    %709 = vmatprep.subr.mxu0 0.0
    %710 = vmatpush1.xpose.msra.mxu0 0.0
    %711 = vmatprep.subr.mxu0 0.0
    %712 = vmatpush1.xpose.msra.mxu0 0.0
    %713 = vmatprep.subr.mxu0 0.0
    %714 = vmatpush1.xpose.msra.mxu0 0.0
    %715 = vmatprep.subr.mxu0 0.0
    %716 = vmatpush1.xpose.msra.mxu0 0.0
    %717 = vmatprep.subr.mxu0 0.0
    %718 = vmatpush1.xpose.msra.mxu0 0.0
    %719 = vmatprep.subr.mxu0 0.0
    %720 = vmatpush1.xpose.msra.mxu0 0.0
    %721 = vmatprep.subr.mxu0 0.0
    %722 = vmatpush1.xpose.msra.mxu0 %v691
    %723 = vmatprep.subr.mxu0 0.0
    %724 = vmatpush1.xpose.msra.mxu0 %v689
    %725 = vmatprep.subr.mxu0 0.0
    %726 = vmatpush2.xpose.msra.mxu0 0.0
    %727 = vmatprep.subr.mxu0 0.0
    %728 = vmatpush2.xpose.msra.mxu0 0.0
    %729 = vmatprep.subr.mxu0 0.0
    %730 = vmatpush2.xpose.msra.mxu0 0.0
    %731 = vmatprep.subr.mxu0 0.0
    %732 = vmatpush2.xpose.msra.mxu0 0.0
    %733 = vmatprep.subr.mxu0 0.0
    %734 = vmatpush2.xpose.msra.mxu0 0.0
    %735 = vmatprep.subr.mxu0 0.0
    %736 = vmatpush2.xpose.msra.mxu0 0.0
    %737 = vmatprep.subr.mxu0 0.0
    %738 = vmatpush2.xpose.msra.mxu0 0.0
    %739 = vmatprep.subr.mxu0 0.0
    %740 = vmatpush2.xpose.msra.mxu0 0.0
    %741 = vmatprep.subr.mxu0 0.0
    %742 = vmatpush2.xpose.msra.mxu0 0.0
    %743 = vmatprep.subr.mxu0 0.0
    %744 = vmatpush2.xpose.msra.mxu0 0.0
    %745 = vmatprep.subr.mxu0 0.0
    %746 = vmatpush2.xpose.msra.mxu0 0.0
    %747 = vmatprep.subr.mxu0 0.0
    %748 = vmatpush2.xpose.msra.mxu0 0.0
    %749 = vmatprep.subr.mxu0 0.0
    %750 = vmatpush2.xpose.msra.mxu0 0.0
    %751 = vmatprep.subr.mxu0 0.0
    %752 = vmatpush2.xpose.msra.mxu0 0.0
    %753 = vmatprep.subr.mxu0 0.0
    %754 = vmatpush2.xpose.msra.mxu0 0.0
    %755 = vmatprep.subr.mxu0 0.0
    %756 = vmatpush2.xpose.msra.mxu0 0.0
    %757 = vmatprep.mubr.f32.mxu0 0.0
    %758 = vmatmul.mubr.f32.gmra.mxu0 %v685
    %v759 = vpop.f32.mrf.mxu0
    %v760 = vadd.f32 %v484, %v759
    %v761 = vpop.f32.mrf.mxu0
    %762 = vmatprep.mubr.f32.mxu0 0.0
    %763 = vmatmul.mubr.f32.gmra.mxu0 %v687
    %v764 = vpop.f32.mrf.mxu0
    %v765 = vadd.f32 %v485, %v764
    %v766 = vpop.f32.mrf.mxu0
    %767 = vdwg.mxu0
    %v768 = vsel %vm486, %v760, -inf
    %769 = vmax.xlane.f32.xlu0 %v768
    %v770 = vpop.xlane.xlu0 %769
    %v771 = vsel %vm486, %v765, -inf
    %772 = vmax.xlane.f32.xlu0 %v771
    %v773 = vpop.xlane.xlu0 %772
    %v774 = vsub.f32 %v760, %v770
    %v775 = vsub.f32 %v765, %v773
    %v776 = vmul.f32 %v774, 1.442695
    %v777 = vpow.pop %v776
    %v778 = vmul.f32 %v775, 1.442695
    %v779 = vpow.pop %v778
    %v780 = vsel %vm486, %v777, 0.0
    %781 = vadd.xlane.f32.xlu0 %v780
    %v782 = vpop.xlane.xlu0 %781
    %v783 = vsel %vm486, %v779, 0.0
    %784 = vadd.xlane.f32.xlu0 %v783
    %v785 = vpop.xlane.xlu0 %784
    %v786 = vrcp.pop %v782
    %v787 = vrcp.pop %v785
    %v788 = vmul.f32 %v777, %v786
    %v789 = vmul.f32 %v779, %v787
    %792 = vrot.lane.b32.xlu0 %v383, 112
    %v793 = vpop.permute.xlu0 %792
    %794 = vrot.lane.b32.xlu0 %v389, 112
    %v795 = vpop.permute.xlu0 %794
    %v799 = vsel %vm486, %v788, 0
    %v802 = vsel %vm486, %v789, 0
    %804 = vmatprep.subr.mxu0 0.0
    %805 = vmatpush1.msra.mxu0 0.0
    %806 = vmatprep.subr.mxu0 0.0
    %807 = vmatpush1.msra.mxu0 0.0
    %808 = vmatprep.subr.mxu0 0.0
    %809 = vmatpush1.msra.mxu0 0.0
    %810 = vmatprep.subr.mxu0 0.0
    %811 = vmatpush1.msra.mxu0 0.0
    %812 = vmatprep.subr.mxu0 0.0
    %813 = vmatpush1.msra.mxu0 0.0
    %814 = vmatprep.subr.mxu0 0.0
    %815 = vmatpush1.msra.mxu0 0.0
    %816 = vmatprep.subr.mxu0 0.0
    %817 = vmatpush1.msra.mxu0 0.0
    %818 = vmatprep.subr.mxu0 0.0
    %819 = vmatpush1.msra.mxu0 0.0
    %820 = vmatprep.subr.mxu0 0.0
    %821 = vmatpush1.msra.mxu0 0.0
    %822 = vmatprep.subr.mxu0 0.0
    %823 = vmatpush1.msra.mxu0 0.0
    %824 = vmatprep.subr.mxu0 0.0
    %825 = vmatpush1.msra.mxu0 0.0
    %826 = vmatprep.subr.mxu0 0.0
    %827 = vmatpush1.msra.mxu0 0.0
    %828 = vmatprep.subr.mxu0 0.0
    %829 = vmatpush1.msra.mxu0 0.0
    %830 = vmatprep.subr.mxu0 0.0
    %831 = vmatpush1.msra.mxu0 0.0
    %832 = vmatprep.subr.mxu0 0.0
    %833 = vmatpush1.msra.mxu0 %v795
    %834 = vmatprep.subr.mxu0 0.0
    %835 = vmatpush1.msra.mxu0 %v793
    %836 = vmatprep.subr.mxu0 0.0
    %837 = vmatpush2.msra.mxu0 0.0
    %838 = vmatprep.subr.mxu0 0.0
    %839 = vmatpush2.msra.mxu0 0.0
    %840 = vmatprep.subr.mxu0 0.0
    %841 = vmatpush2.msra.mxu0 0.0
    %842 = vmatprep.subr.mxu0 0.0
    %843 = vmatpush2.msra.mxu0 0.0
    %844 = vmatprep.subr.mxu0 0.0
    %845 = vmatpush2.msra.mxu0 0.0
    %846 = vmatprep.subr.mxu0 0.0
    %847 = vmatpush2.msra.mxu0 0.0
    %848 = vmatprep.subr.mxu0 0.0
    %849 = vmatpush2.msra.mxu0 0.0
    %850 = vmatprep.subr.mxu0 0.0
    %851 = vmatpush2.msra.mxu0 0.0
    %852 = vmatprep.subr.mxu0 0.0
    %853 = vmatpush2.msra.mxu0 0.0
    %854 = vmatprep.subr.mxu0 0.0
    %855 = vmatpush2.msra.mxu0 0.0
    %856 = vmatprep.subr.mxu0 0.0
    %857 = vmatpush2.msra.mxu0 0.0
    %858 = vmatprep.subr.mxu0 0.0
    %859 = vmatpush2.msra.mxu0 0.0
    %860 = vmatprep.subr.mxu0 0.0
    %861 = vmatpush2.msra.mxu0 0.0
    %862 = vmatprep.subr.mxu0 0.0
    %863 = vmatpush2.msra.mxu0 0.0
    %864 = vmatprep.subr.mxu0 0.0
    %865 = vmatpush2.msra.mxu0 0.0
    %866 = vmatprep.subr.mxu0 0.0
    %867 = vmatpush2.msra.mxu0 0.0
    %868 = vmatprep.mubr.f32.mxu0 0.0
    %869 = vmatmul.mubr.f32.gmra.mxu0 %v799
    %v870 = vpop.f32.mrf.mxu0
    %v871 = vadd.f32 0.0, %v870
    %v872 = vpop.f32.mrf.mxu0
    %873 = vmatprep.mubr.f32.mxu0 0.0
    %874 = vmatmul.mubr.f32.gmra.mxu0 %v802
    %v875 = vpop.f32.mrf.mxu0
    %v876 = vadd.f32 0.0, %v875
    %v877 = vpop.f32.mrf.mxu0
    %878 = vdwg.mxu0
    %879 = vrot.lane.b32.xlu0 %v476, 96
    %v880 = vpop.permute.xlu0 %879
    %881 = vrot.lane.b32.xlu0 %v477, 96
    %v882 = vpop.permute.xlu0 %881
    %883 = vrot.lane.b32.xlu0 %v482, 96
    %v884 = vpop.permute.xlu0 %883
    %885 = vrot.lane.b32.xlu0 %v483, 96
    %v886 = vpop.permute.xlu0 %885
    %v887 = vsel %vm486, %v880, 0
    %v889 = vsel %vm486, %v882, 0
    %v891 = vsel %vm486, %v884, 0
    %v893 = vsel %vm486, %v886, 0
    %895 = vmatprep.subr.mxu0 0.0
    %896 = vmatpush1.xpose.msra.mxu0 0.0
    %897 = vmatprep.subr.mxu0 0.0
    %898 = vmatpush1.xpose.msra.mxu0 0.0
    %899 = vmatprep.subr.mxu0 0.0
    %900 = vmatpush1.xpose.msra.mxu0 0.0
    %901 = vmatprep.subr.mxu0 0.0
    %902 = vmatpush1.xpose.msra.mxu0 0.0
    %903 = vmatprep.subr.mxu0 0.0
    %904 = vmatpush1.xpose.msra.mxu0 0.0
    %905 = vmatprep.subr.mxu0 0.0
    %906 = vmatpush1.xpose.msra.mxu0 0.0
    %907 = vmatprep.subr.mxu0 0.0
    %908 = vmatpush1.xpose.msra.mxu0 0.0
    %909 = vmatprep.subr.mxu0 0.0
    %910 = vmatpush1.xpose.msra.mxu0 0.0
    %911 = vmatprep.subr.mxu0 0.0
    %912 = vmatpush1.xpose.msra.mxu0 0.0
    %913 = vmatprep.subr.mxu0 0.0
    %914 = vmatpush1.xpose.msra.mxu0 0.0
    %915 = vmatprep.subr.mxu0 0.0
    %916 = vmatpush1.xpose.msra.mxu0 0.0
    %917 = vmatprep.subr.mxu0 0.0
    %918 = vmatpush1.xpose.msra.mxu0 0.0
    %919 = vmatprep.subr.mxu0 0.0
    %920 = vmatpush1.xpose.msra.mxu0 0.0
    %921 = vmatprep.subr.mxu0 0.0
    %922 = vmatpush1.xpose.msra.mxu0 0.0
    %923 = vmatprep.subr.mxu0 0.0
    %924 = vmatpush1.xpose.msra.mxu0 %v893
    %925 = vmatprep.subr.mxu0 0.0
    %926 = vmatpush1.xpose.msra.mxu0 %v891
    %927 = vmatprep.subr.mxu0 0.0
    %928 = vmatpush2.xpose.msra.mxu0 0.0
    %929 = vmatprep.subr.mxu0 0.0
    %930 = vmatpush2.xpose.msra.mxu0 0.0
    %931 = vmatprep.subr.mxu0 0.0
    %932 = vmatpush2.xpose.msra.mxu0 0.0
    %933 = vmatprep.subr.mxu0 0.0
    %934 = vmatpush2.xpose.msra.mxu0 0.0
    %935 = vmatprep.subr.mxu0 0.0
    %936 = vmatpush2.xpose.msra.mxu0 0.0
    %937 = vmatprep.subr.mxu0 0.0
    %938 = vmatpush2.xpose.msra.mxu0 0.0
    %939 = vmatprep.subr.mxu0 0.0
    %940 = vmatpush2.xpose.msra.mxu0 0.0
    %941 = vmatprep.subr.mxu0 0.0
    %942 = vmatpush2.xpose.msra.mxu0 0.0
    %943 = vmatprep.subr.mxu0 0.0
    %944 = vmatpush2.xpose.msra.mxu0 0.0
    %945 = vmatprep.subr.mxu0 0.0
    %946 = vmatpush2.xpose.msra.mxu0 0.0
    %947 = vmatprep.subr.mxu0 0.0
    %948 = vmatpush2.xpose.msra.mxu0 0.0
    %949 = vmatprep.subr.mxu0 0.0
    %950 = vmatpush2.xpose.msra.mxu0 0.0
    %951 = vmatprep.subr.mxu0 0.0
    %952 = vmatpush2.xpose.msra.mxu0 0.0
    %953 = vmatprep.subr.mxu0 0.0
    %954 = vmatpush2.xpose.msra.mxu0 0.0
    %955 = vmatprep.subr.mxu0 0.0
    %956 = vmatpush2.xpose.msra.mxu0 0.0
    %957 = vmatprep.subr.mxu0 0.0
    %958 = vmatpush2.xpose.msra.mxu0 0.0
    %959 = vmatprep.mubr.f32.mxu0 0.0
    %960 = vmatmul.mubr.f32.gmra.mxu0 %v887
    %v961 = vpop.f32.mrf.mxu0
    %v962 = vadd.f32 %v484, %v961
    %v963 = vpop.f32.mrf.mxu0
    %964 = vmatprep.mubr.f32.mxu0 0.0
    %965 = vmatmul.mubr.f32.gmra.mxu0 %v889
    %v966 = vpop.f32.mrf.mxu0
    %v967 = vadd.f32 %v485, %v966
    %v968 = vpop.f32.mrf.mxu0
    %969 = vdwg.mxu0
    %v970 = vsel %vm486, %v962, -inf
    %971 = vmax.xlane.f32.xlu0 %v970
    %v972 = vpop.xlane.xlu0 %971
    %v973 = vsel %vm486, %v967, -inf
    %974 = vmax.xlane.f32.xlu0 %v973
    %v975 = vpop.xlane.xlu0 %974
    %v976 = vsub.f32 %v962, %v972
    %v977 = vsub.f32 %v967, %v975
    %v978 = vmul.f32 %v976, 1.442695
    %v979 = vpow.pop %v978
    %v980 = vmul.f32 %v977, 1.442695
    %v981 = vpow.pop %v980
    %v982 = vsel %vm486, %v979, 0.0
    %983 = vadd.xlane.f32.xlu0 %v982
    %v984 = vpop.xlane.xlu0 %983
    %v985 = vsel %vm486, %v981, 0.0
    %986 = vadd.xlane.f32.xlu0 %v985
    %v987 = vpop.xlane.xlu0 %986
    %v988 = vrcp.pop %v984
    %v989 = vrcp.pop %v987
    %v990 = vmul.f32 %v979, %v988
    %v991 = vmul.f32 %v981, %v989
    %992 = vrot.lane.b32.xlu0 %v383, 96
    %v993 = vpop.permute.xlu0 %992
    %994 = vrot.lane.b32.xlu0 %v389, 96
    %v995 = vpop.permute.xlu0 %994
    %v999 = vsel %vm486, %v990, 0
    %v1002 = vsel %vm486, %v991, 0
    %1004 = vmatprep.subr.mxu0 0.0
    %1005 = vmatpush1.msra.mxu0 0.0
    %1006 = vmatprep.subr.mxu0 0.0
    %1007 = vmatpush1.msra.mxu0 0.0
    %1008 = vmatprep.subr.mxu0 0.0
    %1009 = vmatpush1.msra.mxu0 0.0
    %1010 = vmatprep.subr.mxu0 0.0
    %1011 = vmatpush1.msra.mxu0 0.0
    %1012 = vmatprep.subr.mxu0 0.0
    %1013 = vmatpush1.msra.mxu0 0.0
    %1014 = vmatprep.subr.mxu0 0.0
    %1015 = vmatpush1.msra.mxu0 0.0
    %1016 = vmatprep.subr.mxu0 0.0
    %1017 = vmatpush1.msra.mxu0 0.0
    %1018 = vmatprep.subr.mxu0 0.0
    %1019 = vmatpush1.msra.mxu0 0.0
    %1020 = vmatprep.subr.mxu0 0.0
    %1021 = vmatpush1.msra.mxu0 0.0
    %1022 = vmatprep.subr.mxu0 0.0
    %1023 = vmatpush1.msra.mxu0 0.0
    %1024 = vmatprep.subr.mxu0 0.0
    %1025 = vmatpush1.msra.mxu0 0.0
    %1026 = vmatprep.subr.mxu0 0.0
    %1027 = vmatpush1.msra.mxu0 0.0
    %1028 = vmatprep.subr.mxu0 0.0
    %1029 = vmatpush1.msra.mxu0 0.0
    %1030 = vmatprep.subr.mxu0 0.0
    %1031 = vmatpush1.msra.mxu0 0.0
    %1032 = vmatprep.subr.mxu0 0.0
    %1033 = vmatpush1.msra.mxu0 %v995
    %1034 = vmatprep.subr.mxu0 0.0
    %1035 = vmatpush1.msra.mxu0 %v993
    %1036 = vmatprep.subr.mxu0 0.0
    %1037 = vmatpush2.msra.mxu0 0.0
    %1038 = vmatprep.subr.mxu0 0.0
    %1039 = vmatpush2.msra.mxu0 0.0
    %1040 = vmatprep.subr.mxu0 0.0
    %1041 = vmatpush2.msra.mxu0 0.0
    %1042 = vmatprep.subr.mxu0 0.0
    %1043 = vmatpush2.msra.mxu0 0.0
    %1044 = vmatprep.subr.mxu0 0.0
    %1045 = vmatpush2.msra.mxu0 0.0
    %1046 = vmatprep.subr.mxu0 0.0
    %1047 = vmatpush2.msra.mxu0 0.0
    %1048 = vmatprep.subr.mxu0 0.0
    %1049 = vmatpush2.msra.mxu0 0.0
    %1050 = vmatprep.subr.mxu0 0.0
    %1051 = vmatpush2.msra.mxu0 0.0
    %1052 = vmatprep.subr.mxu0 0.0
    %1053 = vmatpush2.msra.mxu0 0.0
    %1054 = vmatprep.subr.mxu0 0.0
    %1055 = vmatpush2.msra.mxu0 0.0
    %1056 = vmatprep.subr.mxu0 0.0
    %1057 = vmatpush2.msra.mxu0 0.0
    %1058 = vmatprep.subr.mxu0 0.0
    %1059 = vmatpush2.msra.mxu0 0.0
    %1060 = vmatprep.subr.mxu0 0.0
    %1061 = vmatpush2.msra.mxu0 0.0
    %1062 = vmatprep.subr.mxu0 0.0
    %1063 = vmatpush2.msra.mxu0 0.0
    %1064 = vmatprep.subr.mxu0 0.0
    %1065 = vmatpush2.msra.mxu0 0.0
    %1066 = vmatprep.subr.mxu0 0.0
    %1067 = vmatpush2.msra.mxu0 0.0
    %1068 = vmatprep.mubr.f32.mxu0 0.0
    %1069 = vmatmul.mubr.f32.gmra.mxu0 %v999
    %v1070 = vpop.f32.mrf.mxu0
    %v1071 = vadd.f32 0.0, %v1070
    %v1072 = vpop.f32.mrf.mxu0
    %1073 = vmatprep.mubr.f32.mxu0 0.0
    %1074 = vmatmul.mubr.f32.gmra.mxu0 %v1002
    %v1075 = vpop.f32.mrf.mxu0
    %v1076 = vadd.f32 0.0, %v1075
    %v1077 = vpop.f32.mrf.mxu0
    %1078 = vdwg.mxu0
    %1079 = vrot.lane.b32.xlu0 %v476, 80
    %v1080 = vpop.permute.xlu0 %1079
    %1081 = vrot.lane.b32.xlu0 %v477, 80
    %v1082 = vpop.permute.xlu0 %1081
    %1083 = vrot.lane.b32.xlu0 %v482, 80
    %v1084 = vpop.permute.xlu0 %1083
    %1085 = vrot.lane.b32.xlu0 %v483, 80
    %v1086 = vpop.permute.xlu0 %1085
    %v1087 = vsel %vm486, %v1080, 0
    %v1089 = vsel %vm486, %v1082, 0
    %v1091 = vsel %vm486, %v1084, 0
    %v1093 = vsel %vm486, %v1086, 0
    %1095 = vmatprep.subr.mxu0 0.0
    %1096 = vmatpush1.xpose.msra.mxu0 0.0
    %1097 = vmatprep.subr.mxu0 0.0
    %1098 = vmatpush1.xpose.msra.mxu0 0.0
    %1099 = vmatprep.subr.mxu0 0.0
    %1100 = vmatpush1.xpose.msra.mxu0 0.0
    %1101 = vmatprep.subr.mxu0 0.0
    %1102 = vmatpush1.xpose.msra.mxu0 0.0
    %1103 = vmatprep.subr.mxu0 0.0
    %1104 = vmatpush1.xpose.msra.mxu0 0.0
    %1105 = vmatprep.subr.mxu0 0.0
    %1106 = vmatpush1.xpose.msra.mxu0 0.0
    %1107 = vmatprep.subr.mxu0 0.0
    %1108 = vmatpush1.xpose.msra.mxu0 0.0
    %1109 = vmatprep.subr.mxu0 0.0
    %1110 = vmatpush1.xpose.msra.mxu0 0.0
    %1111 = vmatprep.subr.mxu0 0.0
    %1112 = vmatpush1.xpose.msra.mxu0 0.0
    %1113 = vmatprep.subr.mxu0 0.0
    %1114 = vmatpush1.xpose.msra.mxu0 0.0
    %1115 = vmatprep.subr.mxu0 0.0
    %1116 = vmatpush1.xpose.msra.mxu0 0.0
    %1117 = vmatprep.subr.mxu0 0.0
    %1118 = vmatpush1.xpose.msra.mxu0 0.0
    %1119 = vmatprep.subr.mxu0 0.0
    %1120 = vmatpush1.xpose.msra.mxu0 0.0
    %1121 = vmatprep.subr.mxu0 0.0
    %1122 = vmatpush1.xpose.msra.mxu0 0.0
    %1123 = vmatprep.subr.mxu0 0.0
    %1124 = vmatpush1.xpose.msra.mxu0 %v1093
    %1125 = vmatprep.subr.mxu0 0.0
    %1126 = vmatpush1.xpose.msra.mxu0 %v1091
    %1127 = vmatprep.subr.mxu0 0.0
    %1128 = vmatpush2.xpose.msra.mxu0 0.0
    %1129 = vmatprep.subr.mxu0 0.0
    %1130 = vmatpush2.xpose.msra.mxu0 0.0
    %1131 = vmatprep.subr.mxu0 0.0
    %1132 = vmatpush2.xpose.msra.mxu0 0.0
    %1133 = vmatprep.subr.mxu0 0.0
    %1134 = vmatpush2.xpose.msra.mxu0 0.0
    %1135 = vmatprep.subr.mxu0 0.0
    %1136 = vmatpush2.xpose.msra.mxu0 0.0
    %1137 = vmatprep.subr.mxu0 0.0
    %1138 = vmatpush2.xpose.msra.mxu0 0.0
    %1139 = vmatprep.subr.mxu0 0.0
    %1140 = vmatpush2.xpose.msra.mxu0 0.0
    %1141 = vmatprep.subr.mxu0 0.0
    %1142 = vmatpush2.xpose.msra.mxu0 0.0
    %1143 = vmatprep.subr.mxu0 0.0
    %1144 = vmatpush2.xpose.msra.mxu0 0.0
    %1145 = vmatprep.subr.mxu0 0.0
    %1146 = vmatpush2.xpose.msra.mxu0 0.0
    %1147 = vmatprep.subr.mxu0 0.0
    %1148 = vmatpush2.xpose.msra.mxu0 0.0
    %1149 = vmatprep.subr.mxu0 0.0
    %1150 = vmatpush2.xpose.msra.mxu0 0.0
    %1151 = vmatprep.subr.mxu0 0.0
    %1152 = vmatpush2.xpose.msra.mxu0 0.0
    %1153 = vmatprep.subr.mxu0 0.0
    %1154 = vmatpush2.xpose.msra.mxu0 0.0
    %1155 = vmatprep.subr.mxu0 0.0
    %1156 = vmatpush2.xpose.msra.mxu0 0.0
    %1157 = vmatprep.subr.mxu0 0.0
    %1158 = vmatpush2.xpose.msra.mxu0 0.0
    %1159 = vmatprep.mubr.f32.mxu0 0.0
    %1160 = vmatmul.mubr.f32.gmra.mxu0 %v1087
    %v1161 = vpop.f32.mrf.mxu0
    %v1162 = vadd.f32 %v484, %v1161
    %v1163 = vpop.f32.mrf.mxu0
    %1164 = vmatprep.mubr.f32.mxu0 0.0
    %1165 = vmatmul.mubr.f32.gmra.mxu0 %v1089
    %v1166 = vpop.f32.mrf.mxu0
    %v1167 = vadd.f32 %v485, %v1166
    %v1168 = vpop.f32.mrf.mxu0
    %1169 = vdwg.mxu0
    %v1170 = vsel %vm486, %v1162, -inf
    %1171 = vmax.xlane.f32.xlu0 %v1170
    %v1172 = vpop.xlane.xlu0 %1171
    %v1173 = vsel %vm486, %v1167, -inf
    %1174 = vmax.xlane.f32.xlu0 %v1173
    %v1175 = vpop.xlane.xlu0 %1174
    %v1176 = vsub.f32 %v1162, %v1172
    %v1177 = vsub.f32 %v1167, %v1175
    %v1178 = vmul.f32 %v1176, 1.442695
    %v1179 = vpow.pop %v1178
    %v1180 = vmul.f32 %v1177, 1.442695
    %v1181 = vpow.pop %v1180
    %v1182 = vsel %vm486, %v1179, 0.0
    %1183 = vadd.xlane.f32.xlu0 %v1182
    %v1184 = vpop.xlane.xlu0 %1183
    %v1185 = vsel %vm486, %v1181, 0.0
    %1186 = vadd.xlane.f32.xlu0 %v1185
    %v1187 = vpop.xlane.xlu0 %1186
    %v1188 = vrcp.pop %v1184
    %v1189 = vrcp.pop %v1187
    %v1190 = vmul.f32 %v1179, %v1188
    %v1191 = vmul.f32 %v1181, %v1189
    %1192 = vrot.lane.b32.xlu0 %v383, 80
    %v1193 = vpop.permute.xlu0 %1192
    %1194 = vrot.lane.b32.xlu0 %v389, 80
    %v1195 = vpop.permute.xlu0 %1194
    %v1199 = vsel %vm486, %v1190, 0
    %v1202 = vsel %vm486, %v1191, 0
    %1204 = vmatprep.subr.mxu0 0.0
    %1205 = vmatpush1.msra.mxu0 0.0
    %1206 = vmatprep.subr.mxu0 0.0
    %1207 = vmatpush1.msra.mxu0 0.0
    %1208 = vmatprep.subr.mxu0 0.0
    %1209 = vmatpush1.msra.mxu0 0.0
    %1210 = vmatprep.subr.mxu0 0.0
    %1211 = vmatpush1.msra.mxu0 0.0
    %1212 = vmatprep.subr.mxu0 0.0
    %1213 = vmatpush1.msra.mxu0 0.0
    %1214 = vmatprep.subr.mxu0 0.0
    %1215 = vmatpush1.msra.mxu0 0.0
    %1216 = vmatprep.subr.mxu0 0.0
    %1217 = vmatpush1.msra.mxu0 0.0
    %1218 = vmatprep.subr.mxu0 0.0
    %1219 = vmatpush1.msra.mxu0 0.0
    %1220 = vmatprep.subr.mxu0 0.0
    %1221 = vmatpush1.msra.mxu0 0.0
    %1222 = vmatprep.subr.mxu0 0.0
    %1223 = vmatpush1.msra.mxu0 0.0
    %1224 = vmatprep.subr.mxu0 0.0
    %1225 = vmatpush1.msra.mxu0 0.0
    %1226 = vmatprep.subr.mxu0 0.0
    %1227 = vmatpush1.msra.mxu0 0.0
    %1228 = vmatprep.subr.mxu0 0.0
    %1229 = vmatpush1.msra.mxu0 0.0
    %1230 = vmatprep.subr.mxu0 0.0
    %1231 = vmatpush1.msra.mxu0 0.0
    %1232 = vmatprep.subr.mxu0 0.0
    %1233 = vmatpush1.msra.mxu0 %v1195
    %1234 = vmatprep.subr.mxu0 0.0
    %1235 = vmatpush1.msra.mxu0 %v1193
    %1236 = vmatprep.subr.mxu0 0.0
    %1237 = vmatpush2.msra.mxu0 0.0
    %1238 = vmatprep.subr.mxu0 0.0
    %1239 = vmatpush2.msra.mxu0 0.0
    %1240 = vmatprep.subr.mxu0 0.0
    %1241 = vmatpush2.msra.mxu0 0.0
    %1242 = vmatprep.subr.mxu0 0.0
    %1243 = vmatpush2.msra.mxu0 0.0
    %1244 = vmatprep.subr.mxu0 0.0
    %1245 = vmatpush2.msra.mxu0 0.0
    %1246 = vmatprep.subr.mxu0 0.0
    %1247 = vmatpush2.msra.mxu0 0.0
    %1248 = vmatprep.subr.mxu0 0.0
    %1249 = vmatpush2.msra.mxu0 0.0
    %1250 = vmatprep.subr.mxu0 0.0
    %1251 = vmatpush2.msra.mxu0 0.0
    %1252 = vmatprep.subr.mxu0 0.0
    %1253 = vmatpush2.msra.mxu0 0.0
    %1254 = vmatprep.subr.mxu0 0.0
    %1255 = vmatpush2.msra.mxu0 0.0
    %1256 = vmatprep.subr.mxu0 0.0
    %1257 = vmatpush2.msra.mxu0 0.0
    %1258 = vmatprep.subr.mxu0 0.0
    %1259 = vmatpush2.msra.mxu0 0.0
    %1260 = vmatprep.subr.mxu0 0.0
    %1261 = vmatpush2.msra.mxu0 0.0
    %1262 = vmatprep.subr.mxu0 0.0
    %1263 = vmatpush2.msra.mxu0 0.0
    %1264 = vmatprep.subr.mxu0 0.0
    %1265 = vmatpush2.msra.mxu0 0.0
    %1266 = vmatprep.subr.mxu0 0.0
    %1267 = vmatpush2.msra.mxu0 0.0
    %1268 = vmatprep.mubr.f32.mxu0 0.0
    %1269 = vmatmul.mubr.f32.gmra.mxu0 %v1199
    %v1270 = vpop.f32.mrf.mxu0
    %v1271 = vadd.f32 0.0, %v1270
    %v1272 = vpop.f32.mrf.mxu0
    %1273 = vmatprep.mubr.f32.mxu0 0.0
    %1274 = vmatmul.mubr.f32.gmra.mxu0 %v1202
    %v1275 = vpop.f32.mrf.mxu0
    %v1276 = vadd.f32 0.0, %v1275
    %v1277 = vpop.f32.mrf.mxu0
    %1278 = vdwg.mxu0
    %1281 = vrot.lane.b32.xlu0 %v871, 16
    %v1282 = vpop.permute.xlu0 %1281
    %1283 = vrot.lane.b32.xlu0 %v876, 16
    %v1284 = vpop.permute.xlu0 %1283
    %1289 = vrot.lane.b32.xlu0 %v1071, 32
    %v1290 = vpop.permute.xlu0 %1289
    %1291 = vrot.lane.b32.xlu0 %v1076, 32
    %v1292 = vpop.permute.xlu0 %1291
    %1297 = vrot.lane.b32.xlu0 %v1271, 48
    %v1298 = vpop.permute.xlu0 %1297
    %1299 = vrot.lane.b32.xlu0 %v1276, 48
    %v1300 = vpop.permute.xlu0 %1299
    %v1303 = vsel %vm486, %v669, %v1282
    %v1304 = vsel %vm486, %v674, %v1284
    %vm1305 = vcmask 261120
    %v1306 = vsel %vm1305, %v1303, %v1290
    %v1307 = vsel %vm1305, %v1304, %v1292
    %vm1308 = vcmask 392192
    %v1309 = vsel %vm1308, %v1306, %v1298
    %v1310 = vsel %vm1308, %v1307, %v1300
    %v1311 = vmul.f32 %v385, 0.5
    %v1312 = vmul.f32 %v460, 0.5
    %v1313 = vmul.f32 %v391, 0.5
    %v1314 = vmul.f32 %v465, 0.5
    %v1315 = vmul.f32 %v385, 0.70710677
    %v1316 = vmul.f32 %v460, 0.70710677
    %v1317 = vmul.f32 %v391, 0.70710677
    %v1318 = vmul.f32 %v465, 0.70710677
    %v1319 = verf.f32.pop %v1315
    %v1320 = verf.f32.pop %v1316
    %v1321 = verf.f32.pop %v1317
    %v1322 = verf.f32.pop %v1318
    %v1323 = vadd.f32 %v1319, 1.0
    %v1324 = vadd.f32 %v1320, 1.0
    %v1325 = vadd.f32 %v1321, 1.0
    %v1326 = vadd.f32 %v1322, 1.0
    %v1327 = vmul.f32 %v1311, %v1323
    %v1328 = vmul.f32 %v1312, %v1324
    %v1329 = vmul.f32 %v1313, %v1325
    %v1330 = vmul.f32 %v1314, %v1326
    %v1331 = vld [vmem:[%s3] sm:$0xff]
    %v1332 = vld [vmem:[%s3 + $0x8] sm:$0xff]
    %v1333 = vld [vmem:[%s3 + $0x10] sm:$0xff]
    %v1334 = vld [vmem:[%s3 + $0x18] sm:$0xff]
    %v1335 = vld [vmem:[%s3 + $0x20] sm:$0xff]
    %v1336 = vld [vmem:[%s3 + $0x28] sm:$0xff]
    %v1337 = vld [vmem:[%s3 + $0x30] sm:$0xff]
    %v1338 = vld [vmem:[%s3 + $0x38] sm:$0xff]
    %v1339 = vld [vmem:[%s4] sm:$0xff]
    %v1340 = vld [vmem:[%s4 + $0x8] sm:$0xff]
    %v1341 = vld [vmem:[%s4 + $0x10] sm:$0xff]
    %v1342 = vld [vmem:[%s4 + $0x18] sm:$0xff]
    %v1343 = vld [vmem:[%s4 + $0x20] sm:$0xff]
    %v1344 = vld [vmem:[%s4 + $0x28] sm:$0xff]
    %v1345 = vld [vmem:[%s4 + $0x30] sm:$0xff]
    %v1346 = vld [vmem:[%s4 + $0x38] sm:$0xff]
    %v1347 = vld [vmem:[%s4 + $0x40] sm:$0xff]
    %v1348 = vld [vmem:[%s4 + $0x48] sm:$0xff]
    %v1349 = vld [vmem:[%s4 + $0x50] sm:$0xff]
    %v1350 = vld [vmem:[%s4 + $0x58] sm:$0xff]
    %v1351 = vld [vmem:[%s4 + $0x60] sm:$0xff]
    %v1352 = vld [vmem:[%s4 + $0x68] sm:$0xff]
    %v1353 = vld [vmem:[%s4 + $0x70] sm:$0xff]
    %v1354 = vld [vmem:[%s4 + $0x78] sm:$0xff]
    %v1355 = vld [vmem:[%s4 + $0x80] sm:$0xff]
    %v1356 = vld [vmem:[%s4 + $0x88] sm:$0xff]
    %v1357 = vld [vmem:[%s4 + $0x90] sm:$0xff]
    %v1358 = vld [vmem:[%s4 + $0x98] sm:$0xff]
    %v1359 = vld [vmem:[%s4 + $0xa0] sm:$0xff]
    %v1360 = vld [vmem:[%s4 + $0xa8] sm:$0xff]
    %v1361 = vld [vmem:[%s4 + $0xb0] sm:$0xff]
    %v1362 = vld [vmem:[%s4 + $0xb8] sm:$0xff]
    %v1363 = vld [vmem:[%s4 + $0xc0] sm:$0xff]
    %v1364 = vld [vmem:[%s4 + $0xc8] sm:$0xff]
    %v1365 = vld [vmem:[%s4 + $0xd0] sm:$0xff]
    %v1366 = vld [vmem:[%s4 + $0xd8] sm:$0xff]
    %v1367 = vld [vmem:[%s4 + $0xe0] sm:$0xff]
    %v1368 = vld [vmem:[%s4 + $0xe8] sm:$0xff]
    %v1369 = vld [vmem:[%s4 + $0xf0] sm:$0xff]
    %v1370 = vld [vmem:[%s4 + $0xf8] sm:$0xff]
    %1371 = vmatprep.subr.mxu0 0.0
    %1372 = vmatpush1.msra.mxu0 %v1354
    %1373 = vmatprep.subr.mxu0 0.0
    %1374 = vmatpush1.msra.mxu0 %v1353
    %1375 = vmatprep.subr.mxu0 0.0
    %1376 = vmatpush1.msra.mxu0 %v1352
    %1377 = vmatprep.subr.mxu0 0.0
    %1378 = vmatpush1.msra.mxu0 %v1351
    %1379 = vmatprep.subr.mxu0 0.0
    %1380 = vmatpush1.msra.mxu0 %v1350
    %1381 = vmatprep.subr.mxu0 0.0
    %1382 = vmatpush1.msra.mxu0 %v1349
    %1383 = vmatprep.subr.mxu0 0.0
    %1384 = vmatpush1.msra.mxu0 %v1348
    %1385 = vmatprep.subr.mxu0 0.0
    %1386 = vmatpush1.msra.mxu0 %v1347
    %1387 = vmatprep.subr.mxu0 0.0
    %1388 = vmatpush1.msra.mxu0 %v1346
    %1389 = vmatprep.subr.mxu0 0.0
    %1390 = vmatpush1.msra.mxu0 %v1345
    %1391 = vmatprep.subr.mxu0 0.0
    %1392 = vmatpush1.msra.mxu0 %v1344
    %1393 = vmatprep.subr.mxu0 0.0
    %1394 = vmatpush1.msra.mxu0 %v1343
    %1395 = vmatprep.subr.mxu0 0.0
    %1396 = vmatpush1.msra.mxu0 %v1342
    %1397 = vmatprep.subr.mxu0 0.0
    %1398 = vmatpush1.msra.mxu0 %v1341
    %1399 = vmatprep.subr.mxu0 0.0
    %1400 = vmatpush1.msra.mxu0 %v1340
    %1401 = vmatprep.subr.mxu0 0.0
    %1402 = vmatpush1.msra.mxu0 %v1339
    %1403 = vmatprep.subr.mxu0 0.0
    %1404 = vmatpush2.msra.mxu0 %v1370
    %1405 = vmatprep.subr.mxu0 0.0
    %1406 = vmatpush2.msra.mxu0 %v1369
    %1407 = vmatprep.subr.mxu0 0.0
    %1408 = vmatpush2.msra.mxu0 %v1368
    %1409 = vmatprep.subr.mxu0 0.0
    %1410 = vmatpush2.msra.mxu0 %v1367
    %1411 = vmatprep.subr.mxu0 0.0
    %1412 = vmatpush2.msra.mxu0 %v1366
    %1413 = vmatprep.subr.mxu0 0.0
    %1414 = vmatpush2.msra.mxu0 %v1365
    %1415 = vmatprep.subr.mxu0 0.0
    %1416 = vmatpush2.msra.mxu0 %v1364
    %1417 = vmatprep.subr.mxu0 0.0
    %1418 = vmatpush2.msra.mxu0 %v1363
    %1419 = vmatprep.subr.mxu0 0.0
    %1420 = vmatpush2.msra.mxu0 %v1362
    %1421 = vmatprep.subr.mxu0 0.0
    %1422 = vmatpush2.msra.mxu0 %v1361
    %1423 = vmatprep.subr.mxu0 0.0
    %1424 = vmatpush2.msra.mxu0 %v1360
    %1425 = vmatprep.subr.mxu0 0.0
    %1426 = vmatpush2.msra.mxu0 %v1359
    %1427 = vmatprep.subr.mxu0 0.0
    %1428 = vmatpush2.msra.mxu0 %v1358
    %1429 = vmatprep.subr.mxu0 0.0
    %1430 = vmatpush2.msra.mxu0 %v1357
    %1431 = vmatprep.subr.mxu0 0.0
    %1432 = vmatpush2.msra.mxu0 %v1356
    %1433 = vmatprep.subr.mxu0 0.0
    %1434 = vmatpush2.msra.mxu0 %v1355
    %1435 = vmatprep.mubr.f32.mxu0 %v1328
    %1436 = vmatmul.mubr.f32.gmra.mxu0 %v1327
    %v1437 = vpop.f32.mrf.mxu0
    %v1438 = vadd.f32 0.0, %v1437
    %v1439 = vpop.f32.mrf.mxu0
    %1440 = vmatprep.mubr.f32.mxu0 %v1330
    %1441 = vmatmul.mubr.f32.gmra.mxu0 %v1329
    %v1442 = vpop.f32.mrf.mxu0
    %v1443 = vadd.f32 0.0, %v1442
    %v1444 = vpop.f32.mrf.mxu0
    %1445 = vdwg.mxu0
    %v1447 = vsel %vm35, %v1309, 0
    %v1450 = vsel %vm35, %v1310, 0
    %1452 = vmatprep.subr.mxu0 0.0
    %1453 = vmatpush1.msra.mxu0 0.0
    %1454 = vmatprep.subr.mxu0 0.0
    %1455 = vmatpush1.msra.mxu0 0.0
    %1456 = vmatprep.subr.mxu0 0.0
    %1457 = vmatpush1.msra.mxu0 0.0
    %1458 = vmatprep.subr.mxu0 0.0
    %1459 = vmatpush1.msra.mxu0 0.0
    %1460 = vmatprep.subr.mxu0 0.0
    %1461 = vmatpush1.msra.mxu0 0.0
    %1462 = vmatprep.subr.mxu0 0.0
    %1463 = vmatpush1.msra.mxu0 0.0
    %1464 = vmatprep.subr.mxu0 0.0
    %1465 = vmatpush1.msra.mxu0 0.0
    %1466 = vmatprep.subr.mxu0 0.0
    %1467 = vmatpush1.msra.mxu0 0.0
    %1468 = vmatprep.subr.mxu0 0.0
    %1469 = vmatpush1.msra.mxu0 %v1338
    %1470 = vmatprep.subr.mxu0 0.0
    %1471 = vmatpush1.msra.mxu0 %v1337
    %1472 = vmatprep.subr.mxu0 0.0
    %1473 = vmatpush1.msra.mxu0 %v1336
    %1474 = vmatprep.subr.mxu0 0.0
    %1475 = vmatpush1.msra.mxu0 %v1335
    %1476 = vmatprep.subr.mxu0 0.0
    %1477 = vmatpush1.msra.mxu0 %v1334
    %1478 = vmatprep.subr.mxu0 0.0
    %1479 = vmatpush1.msra.mxu0 %v1333
    %1480 = vmatprep.subr.mxu0 0.0
    %1481 = vmatpush1.msra.mxu0 %v1332
    %1482 = vmatprep.subr.mxu0 0.0
    %1483 = vmatpush1.msra.mxu0 %v1331
    %1484 = vmatprep.subr.mxu0 0.0
    %1485 = vmatpush2.msra.mxu0 0.0
    %1486 = vmatprep.subr.mxu0 0.0
    %1487 = vmatpush2.msra.mxu0 0.0
    %1488 = vmatprep.subr.mxu0 0.0
    %1489 = vmatpush2.msra.mxu0 0.0
    %1490 = vmatprep.subr.mxu0 0.0
    %1491 = vmatpush2.msra.mxu0 0.0
    %1492 = vmatprep.subr.mxu0 0.0
    %1493 = vmatpush2.msra.mxu0 0.0
    %1494 = vmatprep.subr.mxu0 0.0
    %1495 = vmatpush2.msra.mxu0 0.0
    %1496 = vmatprep.subr.mxu0 0.0
    %1497 = vmatpush2.msra.mxu0 0.0
    %1498 = vmatprep.subr.mxu0 0.0
    %1499 = vmatpush2.msra.mxu0 0.0
    %1500 = vmatprep.subr.mxu0 0.0
    %1501 = vmatpush2.msra.mxu0 0.0
    %1502 = vmatprep.subr.mxu0 0.0
    %1503 = vmatpush2.msra.mxu0 0.0
    %1504 = vmatprep.subr.mxu0 0.0
    %1505 = vmatpush2.msra.mxu0 0.0
    %1506 = vmatprep.subr.mxu0 0.0
    %1507 = vmatpush2.msra.mxu0 0.0
    %1508 = vmatprep.subr.mxu0 0.0
    %1509 = vmatpush2.msra.mxu0 0.0
    %1510 = vmatprep.subr.mxu0 0.0
    %1511 = vmatpush2.msra.mxu0 0.0
    %1512 = vmatprep.subr.mxu0 0.0
    %1513 = vmatpush2.msra.mxu0 0.0
    %1514 = vmatprep.subr.mxu0 0.0
    %1515 = vmatpush2.msra.mxu0 0.0
    %1516 = vmatprep.mubr.f32.mxu0 0.0
    %1517 = vmatmul.mubr.f32.gmra.mxu0 %v1447
    %v1518 = vpop.f32.mrf.mxu0
    %v1519 = vadd.f32 %v1438, %v1518
    %v1520 = vpop.f32.mrf.mxu0
    %1521 = vmatprep.mubr.f32.mxu0 0.0
    %1522 = vmatmul.mubr.f32.gmra.mxu0 %v1450
    %v1523 = vpop.f32.mrf.mxu0
    %v1524 = vadd.f32 %v1443, %v1523
    %v1525 = vpop.f32.mrf.mxu0
    %1526 = vdwg.mxu0
    %v1527 = vadd.f32 %v1519, %v33
    %v1528 = vadd.f32 %v1524, %v34
    %v1529 = vld [vmem:[%s5] sm:$0x1]
    %v1531 = vlaneseq
    %v1532 = vshrl.u32 %v1531, 7
    %v1533 = vsub.s32 0, %v1532
    %v1534 = vrot.slane %v1529, %v1533
    %v1536 = vadd.f32 %v1527, %v1534
    %v1537 = vadd.f32 %v1528, %v1534
    %1538 = vst.msk [vmem:[#allocation2] sm:$0xff] %vm35, %v1536
    %1539 = vst.msk [vmem:[#allocation2 + $0x8] sm:$0xff] %vm35, %v1537
    // Predicated region
    $region38: #{block_forward.1} parent=1 // pred_check
      _
    $region39: #{block_forward.1} parent=1 // pred_check_branch
      %1541 = sbr.rel (0) target = $region41
    $region40: #{block_forward.1} parent=1 // pred_region
      %s1543 = ssub.s32 256, 256
      %1544 = vsyncadd [#allocation3], %s1543
      %s1545 = sshll.u32 [#allocation2], 4
      %s1546 = int_to_ptr.vmem [resolvable:$true] %s1545
      %1551 = dma.vmem_to_hbm [thread:$0]  %s1546, 256, %s9, [#allocation3], 128, 128, 8
    $region41: #{block_forward.1} parent=1 // pred_fallthru
      _
    // Predicated region
    $region42: #{block_forward.1} parent=1 // pred_check
      _
    $region43: #{block_forward.1} parent=1 // pred_check_branch
      %1553 = sbr.rel (0) target = $region45
    $region44: #{block_forward.1} parent=1 // pred_region
      %1554 = dma.done [#allocation3], 256
    $region45: #{block_forward.1} parent=1 // pred_fallthru
      _
    %1555 = vsyncpa [#allocation3], 1

</llo_original>
